<compile_context>
chip_gen: v7x
topology: tpu7x:2x2x1
jax: 0.10.0
libtpu: 0.0.40
codegen_flags: <defaults>
</compile_context>

<pallas_src>
import functools

import jax
import jax.numpy as jnp
from jax import lax
from jax.experimental import pallas as pl
from jax.experimental.pallas import tpu as pltpu

_SQRT1_2 = 0.7071067811865476  # 1/sqrt(2)


def _gelu_exact(x):
    # nn.GELU() default: exact erf formulation.
    return 0.5 * x * (1.0 + lax.erf(x * _SQRT1_2))


def _make_fused_mixer_kernel(Bn, L, C, H1, H2):
    """Kernel processing Bn images per grid step; every tensor keeps lanes=C."""

    def kernel(x_ref, w11_ref, b11_ref, w12_ref, b12_ref,
               w21t_ref, b21_ref, gamma_ref, beta_ref,
               w22t_ref, b22_ref, o_ref):
        # Hoisted lane-broadcasts of the column-shaped (lane-dim 1) params —
        # done once per grid step, reused across the per-image loop.
        b21_bc = jnp.broadcast_to(b21_ref[...], (H2, C))
        gamma_bc = jnp.broadcast_to(gamma_ref[...], (H2, C))
        beta_bc = jnp.broadcast_to(beta_ref[...], (H2, C))
        b22_bc = jnp.broadcast_to(b22_ref[...], (L, C))

        # ---- channel-mixing MLP (mlp1): one big matmul over all Bn*L rows ----
        x = x_ref[...].reshape(Bn * L, C)
        x_f32 = x.astype(jnp.float32)
        h1 = jnp.dot(x.astype(jnp.bfloat16), w11_ref[...],
                     preferred_element_type=jnp.float32) + b11_ref[...]
        h1 = _gelu_exact(h1)                                   # f32 [Bn*L, H1]
        y = x_f32 + (jnp.dot(h1.astype(jnp.bfloat16), w12_ref[...],
                             preferred_element_type=jnp.float32)
                     + b12_ref[...])                           # f32 [Bn*L, C]
        y16 = y.astype(jnp.bfloat16)

        # ---- token-mixing MLP (mlp2), per image, no slab transpose ----
        # h2[j, c] = sum_l W21[l, j] * y[l, c] + b21[j]  (lanes stay C)
        for b in range(Bn):
            yb = y[b * L:(b + 1) * L, :]                       # f32 [L, C]
            h2 = jnp.dot(w21t_ref[...], y16[b * L:(b + 1) * L, :],
                         preferred_element_type=jnp.float32) + b21_bc
            # LayerNorm over the hidden axis j (eps=1e-5, biased variance).
            mu = jnp.mean(h2, axis=0, keepdims=True)
            var = jnp.mean((h2 - mu) * (h2 - mu), axis=0, keepdims=True)
            hn = (h2 - mu) * lax.rsqrt(var + 1e-5)
            g = _gelu_exact(hn * gamma_bc + beta_bc)           # f32 [H2, C]
            # y2[l, c] = sum_j W22[j, l] * g[j, c] + b22[l]
            y2 = jnp.dot(w22t_ref[...], g.astype(jnp.bfloat16),
                         preferred_element_type=jnp.float32) + b22_bc
            o_ref[b] = (yb + y2).astype(o_ref.dtype)

    return kernel


def _act_bytes_per_step(bn, L, C, H1, H2, x_itemsize):
    """Rough per-grid-step VMEM need for activations/intermediates."""
    f32, bf16 = 4, 2
    io_blocks = 2 * 2 * bn * L * C * x_itemsize            # x + out, 2-buffered
    channel = bn * L * (H1 * (f32 + bf16) + C * (2 * f32 + bf16))
    token = H2 * C * (3 * f32 + bf16) + L * C * f32
    bcasts = (3 * H2 * C + L * C) * f32
    return io_blocks + channel + token + bcasts


def mlp_mixer_encoder_layer(x, params, *, single_buffer_weights=True):
    """x: [N, L, C] with C == dim1, L == dim2. Returns [N, L, C]."""
    N, L, C = x.shape
    H1 = params["w11"].shape[1]
    H2 = params["w21"].shape[1]

    # bf16 matmul weights (native MXU path); bias / LayerNorm params stay f32.
    w11 = params["w11"].astype(jnp.bfloat16)                  # [C,  H1]
    b11 = params["b11"].reshape(1, H1).astype(jnp.float32)
    w12 = params["w12"].astype(jnp.bfloat16)                  # [H1, C]
    b12 = params["b12"].reshape(1, C).astype(jnp.float32)
    w21t = jnp.transpose(params["w21"]).astype(jnp.bfloat16)  # [H2, L]
    b21 = params["b21"].reshape(H2, 1).astype(jnp.float32)
    gamma = params["gamma"].reshape(H2, 1).astype(jnp.float32)
    beta = params["beta"].reshape(H2, 1).astype(jnp.float32)
    w22t = jnp.transpose(params["w22"]).astype(jnp.bfloat16)  # [L,  H2]
    b22 = params["b22"].reshape(L, 1).astype(jnp.float32)
    weights = (w11, b11, w12, b12, w21t, b21, gamma, beta, w22t, b22)

    itemsize = jnp.dtype(x.dtype).itemsize
    weight_bytes = sum(int(w.size) * jnp.dtype(w.dtype).itemsize
                       for w in weights)

    # Per-generation VMEM capacity with ~1/8 headroom for Mosaic internal
    # scratch / semaphores (≈112 MiB on v5e/v6e, ≈56 MiB on v7x).
    try:
        vmem_cap = int(pltpu.get_tpu_info().vmem_capacity_bytes)
    except Exception:
        vmem_cap = 64 * 1024 * 1024
    vmem_cap = max(vmem_cap, 32 * 1024 * 1024)
    vmem_ceiling = (vmem_cap * 7) // 8

    # Pick Bn = images per grid step: largest that fits the VMEM budget, then
    # halved if needed so the batch axis keeps >= 2 grid steps (megacore).
    act_budget = max(vmem_ceiling - weight_bytes - (4 << 20), 4 << 20)
    Bn = 1
    for cand in (16, 8, 4, 2):
        if (N % cand == 0
                and _act_bytes_per_step(cand, L, C, H1, H2, itemsize)
                <= act_budget):
            Bn = cand
            break
    while Bn > 1 and N // Bn < 2:
        Bn //= 2

    def _weight_spec(shape):
        idx_map = lambda n: (0,) * len(shape)
        if single_buffer_weights:
            # Constant index_map -> double buffering buys nothing; keep a
            # single weight buffer resident (halves weight VMEM on v7x).
            return pl.BlockSpec(shape, idx_map,
                                pipeline_mode=pl.Buffered(buffer_count=1))
        return pl.BlockSpec(shape, idx_map)

    in_specs = [pl.BlockSpec((Bn, L, C), lambda n: (n, 0, 0))]
    in_specs += [_weight_spec(w.shape) for w in weights]

    vmem_limit = int(min(
        max(weight_bytes
            + _act_bytes_per_step(Bn, L, C, H1, H2, itemsize)
            + (8 << 20),
            32 * 1024 * 1024),
        vmem_ceiling))

    flops = 4 * N * L * C * (H1 + H2)
    transcendentals = N * (L * H1 + H2 * C)
    bytes_accessed = 2 * N * L * C * itemsize + weight_bytes

    kernel = _make_fused_mixer_kernel(Bn, L, C, H1, H2)

    return pl.pallas_call(
        kernel,
        out_shape=jax.ShapeDtypeStruct((N, L, C), x.dtype),
        grid=(N // Bn,),
        in_specs=in_specs,
        out_specs=pl.BlockSpec((Bn, L, C), lambda n: (n, 0, 0)),
        compiler_params=pltpu.CompilerParams(
            dimension_semantics=("parallel",),
            vmem_limit_bytes=vmem_limit),
        cost_estimate=pl.CostEstimate(
            flops=int(flops),
            transcendentals=int(transcendentals),
            bytes_accessed=int(bytes_accessed)),
    )(x, *weights)


def init_params(key, dim1, dim2, factor=1, dtype=jnp.float32):
    h1 = dim1 * factor
    h2 = dim2 * factor
    ks = jax.random.split(key, 8)
    s = 0.05
    return {
        # mlp1: Linear(dim1, h1) -> GELU -> Linear(h1, dim1)
        "w11": s * jax.random.normal(ks[0], (dim1, h1), dtype),
        "b11": s * jax.random.normal(ks[1], (1, h1), dtype),
        "w12": s * jax.random.normal(ks[2], (h1, dim1), dtype),
        "b12": s * jax.random.normal(ks[3], (1, dim1), dtype),
        # mlp2: Linear(dim2, h2) -> LayerNorm(h2) -> GELU -> Linear(h2, dim2)
        "w21": s * jax.random.normal(ks[4], (dim2, h2), dtype),
        "b21": s * jax.random.normal(ks[5], (1, h2), dtype),
        "gamma": jnp.ones((1, h2), dtype),
        "beta": jnp.zeros((1, h2), dtype),
        "w22": s * jax.random.normal(ks[6], (h2, dim2), dtype),
        "b22": s * jax.random.normal(ks[7], (1, dim2), dtype),
    }


def reference(x, p):
    """Pure-JAX f32 reference mirroring the PyTorch forward exactly."""
    def gelu(v):
        return 0.5 * v * (1.0 + lax.erf(v * _SQRT1_2))

    h = gelu(x @ p["w11"] + p["b11"][0]) @ p["w12"] + p["b12"][0]
    x = x + h
    xt = jnp.transpose(x, (0, 2, 1))
    h = xt @ p["w21"] + p["b21"][0]
    mu = jnp.mean(h, axis=-1, keepdims=True)
    var = jnp.mean((h - mu) ** 2, axis=-1, keepdims=True)
    hn = (h - mu) / jnp.sqrt(var + 1e-5) * p["gamma"][0] + p["beta"][0]
    h = gelu(hn) @ p["w22"] + p["b22"][0]
    xt = xt + h
    return jnp.transpose(xt, (0, 2, 1))


if __name__ == "__main__":
    N, L, C = 4, 16, 32          # x: [N, L, C];  dim1 = C = 32, dim2 = L = 16
    factor = 1

    key = jax.random.PRNGKey(0)
    kx, kp = jax.random.split(key)
    x = jax.random.normal(kx, (N, L, C), jnp.float32)
    params = init_params(kp, dim1=C, dim2=L, factor=factor)

    fn = jax.jit(functools.partial(mlp_mixer_encoder_layer,
                                   single_buffer_weights=True))
    try:
        out = jax.block_until_ready(fn(x, params))
    except Exception:
        # Fallback for jax builds without BlockSpec(pipeline_mode=Buffered(1)).
        fn = jax.jit(functools.partial(mlp_mixer_encoder_layer,
                                       single_buffer_weights=False))
        out = jax.block_until_ready(fn(x, params))

    ref = reference(x, params)
    assert out.shape == (N, L, C)
    err = float(jnp.max(jnp.abs(out - ref)))
    # bf16 matmul operands (f32 accumulation) vs. the exact f32 reference.
    assert err < 3e-2, err
    print("KERNEL_OK")
</pallas_src>

<mosaic_0001>
module attributes {stable_mosaic.version = 11 : i64} {
  func.func @kernel(%arg0: i32, %arg1: memref<2x16x32xf32, #tpu.memory_space<vmem>>, %arg2: memref<32x32xbf16, #tpu.memory_space<vmem>>, %arg3: memref<1x32xf32, #tpu.memory_space<vmem>>, %arg4: memref<32x32xbf16, #tpu.memory_space<vmem>>, %arg5: memref<1x32xf32, #tpu.memory_space<vmem>>, %arg6: memref<16x16xbf16, #tpu.memory_space<vmem>>, %arg7: memref<16x1xf32, #tpu.memory_space<vmem>>, %arg8: memref<16x1xf32, #tpu.memory_space<vmem>>, %arg9: memref<16x1xf32, #tpu.memory_space<vmem>>, %arg10: memref<16x16xbf16, #tpu.memory_space<vmem>>, %arg11: memref<16x1xf32, #tpu.memory_space<vmem>>, %arg12: memref<2x16x32xf32, #tpu.memory_space<vmem>>) attributes {dimension_semantics = [#tpu.dimension_semantics<parallel>], iteration_bounds = array<i64: 2>, scalar_prefetch = 0 : i64, scratch_operands = 0 : i64, tpu.core_type = #tpu.core_type<tc>, window_params = [{transform_indices = @transform_0, window_bounds = array<i64: 2, 16, 32>}, {pipeline_mode = #tpu.pipeline_mode<synchronous>, transform_indices = @transform_1, window_bounds = array<i64: 32, 32>}, {pipeline_mode = #tpu.pipeline_mode<synchronous>, transform_indices = @transform_2, window_bounds = array<i64: 1, 32>}, {pipeline_mode = #tpu.pipeline_mode<synchronous>, transform_indices = @transform_3, window_bounds = array<i64: 32, 32>}, {pipeline_mode = #tpu.pipeline_mode<synchronous>, transform_indices = @transform_4, window_bounds = array<i64: 1, 32>}, {pipeline_mode = #tpu.pipeline_mode<synchronous>, transform_indices = @transform_5, window_bounds = array<i64: 16, 16>}, {pipeline_mode = #tpu.pipeline_mode<synchronous>, transform_indices = @transform_6, window_bounds = array<i64: 16, 1>}, {pipeline_mode = #tpu.pipeline_mode<synchronous>, transform_indices = @transform_7, window_bounds = array<i64: 16, 1>}, {pipeline_mode = #tpu.pipeline_mode<synchronous>, transform_indices = @transform_8, window_bounds = array<i64: 16, 1>}, {pipeline_mode = #tpu.pipeline_mode<synchronous>, transform_indices = @transform_9, window_bounds = array<i64: 16, 16>}, {pipeline_mode = #tpu.pipeline_mode<synchronous>, transform_indices = @transform_10, window_bounds = array<i64: 16, 1>}, {transform_indices = @transform_11, window_bounds = array<i64: 2, 16, 32>}]} {
    %c0 = arith.constant 0 : index
    %c0_0 = arith.constant 0 : index
    %0 = vector.load %arg7[%c0, %c0_0] : memref<16x1xf32, #tpu.memory_space<vmem>>, vector<16x1xf32>
    %1 = vector.shape_cast %0 : vector<16x1xf32> to vector<16x1xf32>
    %2 = vector.broadcast %1 : vector<16x1xf32> to vector<16x32xf32>
    %c0_1 = arith.constant 0 : index
    %c0_2 = arith.constant 0 : index
    %3 = vector.load %arg8[%c0_1, %c0_2] : memref<16x1xf32, #tpu.memory_space<vmem>>, vector<16x1xf32>
    %4 = vector.shape_cast %3 : vector<16x1xf32> to vector<16x1xf32>
    %5 = vector.broadcast %4 : vector<16x1xf32> to vector<16x32xf32>
    %c0_3 = arith.constant 0 : index
    %c0_4 = arith.constant 0 : index
    %6 = vector.load %arg9[%c0_3, %c0_4] : memref<16x1xf32, #tpu.memory_space<vmem>>, vector<16x1xf32>
    %7 = vector.shape_cast %6 : vector<16x1xf32> to vector<16x1xf32>
    %8 = vector.broadcast %7 : vector<16x1xf32> to vector<16x32xf32>
    %c0_5 = arith.constant 0 : index
    %c0_6 = arith.constant 0 : index
    %9 = vector.load %arg11[%c0_5, %c0_6] : memref<16x1xf32, #tpu.memory_space<vmem>>, vector<16x1xf32>
    %10 = vector.shape_cast %9 : vector<16x1xf32> to vector<16x1xf32>
    %11 = vector.broadcast %10 : vector<16x1xf32> to vector<16x32xf32>
    %c0_7 = arith.constant 0 : index
    %c0_8 = arith.constant 0 : index
    %c0_9 = arith.constant 0 : index
    %12 = vector.load %arg1[%c0_7, %c0_8, %c0_9] : memref<2x16x32xf32, #tpu.memory_space<vmem>>, vector<2x16x32xf32>
    %13 = vector.shape_cast %12 : vector<2x16x32xf32> to vector<32x32xf32>
    %14 = arith.truncf %13 : vector<32x32xf32> to vector<32x32xbf16>
    %c0_10 = arith.constant 0 : index
    %c0_11 = arith.constant 0 : index
    %15 = vector.load %arg2[%c0_10, %c0_11] : memref<32x32xbf16, #tpu.memory_space<vmem>>, vector<32x32xbf16>
    %cst = arith.constant dense<0.000000e+00> : vector<32x32xf32>
    %16 = tpu.matmul %14, %15, %cst {dimension_numbers = #tpu.dot_dimension_numbers<[1], [0], [0], [1], [0, 0, 1, 1], [], []>} : vector<32x32xbf16>, vector<32x32xbf16>, vector<32x32xf32> -> vector<32x32xf32>
    %c0_12 = arith.constant 0 : index
    %c0_13 = arith.constant 0 : index
    %17 = vector.load %arg3[%c0_12, %c0_13] : memref<1x32xf32, #tpu.memory_space<vmem>>, vector<1x32xf32>
    %18 = vector.broadcast %17 : vector<1x32xf32> to vector<32x32xf32>
    %19 = arith.addf %16, %18 : vector<32x32xf32>
    %cst_14 = arith.constant 5.000000e-01 : f32
    %20 = vector.broadcast %cst_14 : f32 to vector<32x32xf32>
    %21 = arith.mulf %20, %19 : vector<32x32xf32>
    %cst_15 = arith.constant 0.707106769 : f32
    %22 = vector.broadcast %cst_15 : f32 to vector<32x32xf32>
    %23 = arith.mulf %19, %22 : vector<32x32xf32>
    %24 = math.erf %23 : vector<32x32xf32>
    %cst_16 = arith.constant 1.000000e+00 : f32
    %25 = vector.broadcast %cst_16 : f32 to vector<32x32xf32>
    %26 = arith.addf %25, %24 : vector<32x32xf32>
    %27 = arith.mulf %21, %26 : vector<32x32xf32>
    %28 = arith.truncf %27 : vector<32x32xf32> to vector<32x32xbf16>
    %c0_17 = arith.constant 0 : index
    %c0_18 = arith.constant 0 : index
    %29 = vector.load %arg4[%c0_17, %c0_18] : memref<32x32xbf16, #tpu.memory_space<vmem>>, vector<32x32xbf16>
    %cst_19 = arith.constant dense<0.000000e+00> : vector<32x32xf32>
    %30 = tpu.matmul %28, %29, %cst_19 {dimension_numbers = #tpu.dot_dimension_numbers<[1], [0], [0], [1], [0, 0, 1, 1], [], []>} : vector<32x32xbf16>, vector<32x32xbf16>, vector<32x32xf32> -> vector<32x32xf32>
    %c0_20 = arith.constant 0 : index
    %c0_21 = arith.constant 0 : index
    %31 = vector.load %arg5[%c0_20, %c0_21] : memref<1x32xf32, #tpu.memory_space<vmem>>, vector<1x32xf32>
    %32 = vector.broadcast %31 : vector<1x32xf32> to vector<32x32xf32>
    %33 = arith.addf %30, %32 : vector<32x32xf32>
    %34 = arith.addf %13, %33 : vector<32x32xf32>
    %35 = arith.truncf %34 : vector<32x32xf32> to vector<32x32xbf16>
    %36 = vector.extract_strided_slice %34 {offsets = [0, 0], sizes = [16, 32], strides = [1, 1]} : vector<32x32xf32> to vector<16x32xf32>
    %c0_22 = arith.constant 0 : index
    %c0_23 = arith.constant 0 : index
    %37 = vector.load %arg6[%c0_22, %c0_23] : memref<16x16xbf16, #tpu.memory_space<vmem>>, vector<16x16xbf16>
    %38 = vector.extract_strided_slice %35 {offsets = [0, 0], sizes = [16, 32], strides = [1, 1]} : vector<32x32xbf16> to vector<16x32xbf16>
    %cst_24 = arith.constant dense<0.000000e+00> : vector<16x32xf32>
    %39 = tpu.matmul %37, %38, %cst_24 {dimension_numbers = #tpu.dot_dimension_numbers<[1], [0], [0], [1], [0, 0, 1, 1], [], []>} : vector<16x16xbf16>, vector<16x32xbf16>, vector<16x32xf32> -> vector<16x32xf32>
    %40 = arith.addf %39, %2 : vector<16x32xf32>
    %cst_25 = arith.constant dense<0.000000e+00> : vector<32xf32>
    %41 = vector.multi_reduction <add>, %40, %cst_25 [0] : vector<16x32xf32> to vector<32xf32>
    %42 = vector.shape_cast %41 : vector<32xf32> to vector<1x32xf32>
    %cst_26 = arith.constant 1.600000e+01 : f32
    %43 = vector.broadcast %cst_26 : f32 to vector<1x32xf32>
    %44 = arith.divf %42, %43 : vector<1x32xf32>
    %45 = vector.broadcast %44 : vector<1x32xf32> to vector<16x32xf32>
    %46 = arith.subf %40, %45 : vector<16x32xf32>
    %47 = vector.broadcast %44 : vector<1x32xf32> to vector<16x32xf32>
    %48 = arith.subf %40, %47 : vector<16x32xf32>
    %49 = arith.mulf %46, %48 : vector<16x32xf32>
    %cst_27 = arith.constant dense<0.000000e+00> : vector<32xf32>
    %50 = vector.multi_reduction <add>, %49, %cst_27 [0] : vector<16x32xf32> to vector<32xf32>
    %51 = vector.shape_cast %50 : vector<32xf32> to vector<1x32xf32>
    %cst_28 = arith.constant 1.600000e+01 : f32
    %52 = vector.broadcast %cst_28 : f32 to vector<1x32xf32>
    %53 = arith.divf %51, %52 : vector<1x32xf32>
    %54 = vector.broadcast %44 : vector<1x32xf32> to vector<16x32xf32>
    %55 = arith.subf %40, %54 : vector<16x32xf32>
    %cst_29 = arith.constant 9.99999974E-6 : f32
    %56 = vector.broadcast %cst_29 : f32 to vector<1x32xf32>
    %57 = arith.addf %53, %56 : vector<1x32xf32>
    %58 = math.rsqrt %57 : vector<1x32xf32>
    %59 = vector.broadcast %58 : vector<1x32xf32> to vector<16x32xf32>
    %60 = arith.mulf %55, %59 : vector<16x32xf32>
    %61 = arith.mulf %60, %5 : vector<16x32xf32>
    %62 = arith.addf %61, %8 : vector<16x32xf32>
    %cst_30 = arith.constant 5.000000e-01 : f32
    %63 = vector.broadcast %cst_30 : f32 to vector<16x32xf32>
    %64 = arith.mulf %63, %62 : vector<16x32xf32>
    %cst_31 = arith.constant 0.707106769 : f32
    %65 = vector.broadcast %cst_31 : f32 to vector<16x32xf32>
    %66 = arith.mulf %62, %65 : vector<16x32xf32>
    %67 = math.erf %66 : vector<16x32xf32>
    %cst_32 = arith.constant 1.000000e+00 : f32
    %68 = vector.broadcast %cst_32 : f32 to vector<16x32xf32>
    %69 = arith.addf %68, %67 : vector<16x32xf32>
    %70 = arith.mulf %64, %69 : vector<16x32xf32>
    %c0_33 = arith.constant 0 : index
    %c0_34 = arith.constant 0 : index
    %71 = vector.load %arg10[%c0_33, %c0_34] : memref<16x16xbf16, #tpu.memory_space<vmem>>, vector<16x16xbf16>
    %72 = arith.truncf %70 : vector<16x32xf32> to vector<16x32xbf16>
    %cst_35 = arith.constant dense<0.000000e+00> : vector<16x32xf32>
    %73 = tpu.matmul %71, %72, %cst_35 {dimension_numbers = #tpu.dot_dimension_numbers<[1], [0], [0], [1], [0, 0, 1, 1], [], []>} : vector<16x16xbf16>, vector<16x32xbf16>, vector<16x32xf32> -> vector<16x32xf32>
    %74 = arith.addf %73, %11 : vector<16x32xf32>
    %75 = arith.addf %36, %74 : vector<16x32xf32>
    %c0_36 = arith.constant 0 : index
    %c0_37 = arith.constant 0 : index
    %c0_38 = arith.constant 0 : index
    %76 = vector.load %arg12[%c0_36, %c0_37, %c0_38] : memref<2x16x32xf32, #tpu.memory_space<vmem>>, vector<1x16x32xf32>
    %77 = vector.shape_cast %76 : vector<1x16x32xf32> to vector<16x32xf32>
    %78 = vector.shape_cast %75 : vector<16x32xf32> to vector<1x16x32xf32>
    tpu.vector_store %arg12[%c0_36, %c0_37, %c0_38], %78 {strides = array<i32>} : memref<2x16x32xf32, #tpu.memory_space<vmem>>, vector<1x16x32xf32>,
    %79 = vector.extract_strided_slice %34 {offsets = [16, 0], sizes = [16, 32], strides = [1, 1]} : vector<32x32xf32> to vector<16x32xf32>
    %c0_39 = arith.constant 0 : index
    %c0_40 = arith.constant 0 : index
    %80 = vector.load %arg6[%c0_39, %c0_40] : memref<16x16xbf16, #tpu.memory_space<vmem>>, vector<16x16xbf16>
    %81 = vector.extract_strided_slice %35 {offsets = [16, 0], sizes = [16, 32], strides = [1, 1]} : vector<32x32xbf16> to vector<16x32xbf16>
    %cst_41 = arith.constant dense<0.000000e+00> : vector<16x32xf32>
    %82 = tpu.matmul %80, %81, %cst_41 {dimension_numbers = #tpu.dot_dimension_numbers<[1], [0], [0], [1], [0, 0, 1, 1], [], []>} : vector<16x16xbf16>, vector<16x32xbf16>, vector<16x32xf32> -> vector<16x32xf32>
    %83 = arith.addf %82, %2 : vector<16x32xf32>
    %cst_42 = arith.constant dense<0.000000e+00> : vector<32xf32>
    %84 = vector.multi_reduction <add>, %83, %cst_42 [0] : vector<16x32xf32> to vector<32xf32>
    %85 = vector.shape_cast %84 : vector<32xf32> to vector<1x32xf32>
    %cst_43 = arith.constant 1.600000e+01 : f32
    %86 = vector.broadcast %cst_43 : f32 to vector<1x32xf32>
    %87 = arith.divf %85, %86 : vector<1x32xf32>
    %88 = vector.broadcast %87 : vector<1x32xf32> to vector<16x32xf32>
    %89 = arith.subf %83, %88 : vector<16x32xf32>
    %90 = vector.broadcast %87 : vector<1x32xf32> to vector<16x32xf32>
    %91 = arith.subf %83, %90 : vector<16x32xf32>
    %92 = arith.mulf %89, %91 : vector<16x32xf32>
    %cst_44 = arith.constant dense<0.000000e+00> : vector<32xf32>
    %93 = vector.multi_reduction <add>, %92, %cst_44 [0] : vector<16x32xf32> to vector<32xf32>
    %94 = vector.shape_cast %93 : vector<32xf32> to vector<1x32xf32>
    %cst_45 = arith.constant 1.600000e+01 : f32
    %95 = vector.broadcast %cst_45 : f32 to vector<1x32xf32>
    %96 = arith.divf %94, %95 : vector<1x32xf32>
    %97 = vector.broadcast %87 : vector<1x32xf32> to vector<16x32xf32>
    %98 = arith.subf %83, %97 : vector<16x32xf32>
    %cst_46 = arith.constant 9.99999974E-6 : f32
    %99 = vector.broadcast %cst_46 : f32 to vector<1x32xf32>
    %100 = arith.addf %96, %99 : vector<1x32xf32>
    %101 = math.rsqrt %100 : vector<1x32xf32>
    %102 = vector.broadcast %101 : vector<1x32xf32> to vector<16x32xf32>
    %103 = arith.mulf %98, %102 : vector<16x32xf32>
    %104 = arith.mulf %103, %5 : vector<16x32xf32>
    %105 = arith.addf %104, %8 : vector<16x32xf32>
    %cst_47 = arith.constant 5.000000e-01 : f32
    %106 = vector.broadcast %cst_47 : f32 to vector<16x32xf32>
    %107 = arith.mulf %106, %105 : vector<16x32xf32>
    %cst_48 = arith.constant 0.707106769 : f32
    %108 = vector.broadcast %cst_48 : f32 to vector<16x32xf32>
    %109 = arith.mulf %105, %108 : vector<16x32xf32>
    %110 = math.erf %109 : vector<16x32xf32>
    %cst_49 = arith.constant 1.000000e+00 : f32
    %111 = vector.broadcast %cst_49 : f32 to vector<16x32xf32>
    %112 = arith.addf %111, %110 : vector<16x32xf32>
    %113 = arith.mulf %107, %112 : vector<16x32xf32>
    %c0_50 = arith.constant 0 : index
    %c0_51 = arith.constant 0 : index
    %114 = vector.load %arg10[%c0_50, %c0_51] : memref<16x16xbf16, #tpu.memory_space<vmem>>, vector<16x16xbf16>
    %115 = arith.truncf %113 : vector<16x32xf32> to vector<16x32xbf16>
    %cst_52 = arith.constant dense<0.000000e+00> : vector<16x32xf32>
    %116 = tpu.matmul %114, %115, %cst_52 {dimension_numbers = #tpu.dot_dimension_numbers<[1], [0], [0], [1], [0, 0, 1, 1], [], []>} : vector<16x16xbf16>, vector<16x32xbf16>, vector<16x32xf32> -> vector<16x32xf32>
    %117 = arith.addf %116, %11 : vector<16x32xf32>
    %118 = arith.addf %79, %117 : vector<16x32xf32>
    %c1 = arith.constant 1 : index
    %c0_53 = arith.constant 0 : index
    %c0_54 = arith.constant 0 : index
    %119 = vector.load %arg12[%c1, %c0_53, %c0_54] : memref<2x16x32xf32, #tpu.memory_space<vmem>>, vector<1x16x32xf32>
    %120 = vector.shape_cast %119 : vector<1x16x32xf32> to vector<16x32xf32>
    %121 = vector.shape_cast %118 : vector<16x32xf32> to vector<1x16x32xf32>
    tpu.vector_store %arg12[%c1, %c0_53, %c0_54], %121 {strides = array<i32>} : memref<2x16x32xf32, #tpu.memory_space<vmem>>, vector<1x16x32xf32>,
    return
  }
  func.func @transform_0(%arg0: i32) -> (i32, i32, i32) {
    %c0_i32 = arith.constant 0 : i32
    %c0_i32_0 = arith.constant 0 : i32
    %c0_i32_1 = arith.constant 0 : i32
    return %arg0, %c0_i32, %c0_i32_0 : i32, i32, i32
  }
  func.func @transform_1(%arg0: i32) -> (i32, i32) {
    %c0_i32 = arith.constant 0 : i32
    %c0_i32_0 = arith.constant 0 : i32
    %c0_i32_1 = arith.constant 0 : i32
    return %c0_i32, %c0_i32_0 : i32, i32
  }
  func.func @transform_2(%arg0: i32) -> (i32, i32) {
    %c0_i32 = arith.constant 0 : i32
    %c0_i32_0 = arith.constant 0 : i32
    %c0_i32_1 = arith.constant 0 : i32
    return %c0_i32, %c0_i32_0 : i32, i32
  }
  func.func @transform_3(%arg0: i32) -> (i32, i32) {
    %c0_i32 = arith.constant 0 : i32
    %c0_i32_0 = arith.constant 0 : i32
    %c0_i32_1 = arith.constant 0 : i32
    return %c0_i32, %c0_i32_0 : i32, i32
  }
  func.func @transform_4(%arg0: i32) -> (i32, i32) {
    %c0_i32 = arith.constant 0 : i32
    %c0_i32_0 = arith.constant 0 : i32
    %c0_i32_1 = arith.constant 0 : i32
    return %c0_i32, %c0_i32_0 : i32, i32
  }
  func.func @transform_5(%arg0: i32) -> (i32, i32) {
    %c0_i32 = arith.constant 0 : i32
    %c0_i32_0 = arith.constant 0 : i32
    %c0_i32_1 = arith.constant 0 : i32
    return %c0_i32, %c0_i32_0 : i32, i32
  }
  func.func @transform_6(%arg0: i32) -> (i32, i32) {
    %c0_i32 = arith.constant 0 : i32
    %c0_i32_0 = arith.constant 0 : i32
    %c0_i32_1 = arith.constant 0 : i32
    return %c0_i32, %c0_i32_0 : i32, i32
  }
  func.func @transform_7(%arg0: i32) -> (i32, i32) {
    %c0_i32 = arith.constant 0 : i32
    %c0_i32_0 = arith.constant 0 : i32
    %c0_i32_1 = arith.constant 0 : i32
    return %c0_i32, %c0_i32_0 : i32, i32
  }
  func.func @transform_8(%arg0: i32) -> (i32, i32) {
    %c0_i32 = arith.constant 0 : i32
    %c0_i32_0 = arith.constant 0 : i32
    %c0_i32_1 = arith.constant 0 : i32
    return %c0_i32, %c0_i32_0 : i32, i32
  }
  func.func @transform_9(%arg0: i32) -> (i32, i32) {
    %c0_i32 = arith.constant 0 : i32
    %c0_i32_0 = arith.constant 0 : i32
    %c0_i32_1 = arith.constant 0 : i32
    return %c0_i32, %c0_i32_0 : i32, i32
  }
  func.func @transform_10(%arg0: i32) -> (i32, i32) {
    %c0_i32 = arith.constant 0 : i32
    %c0_i32_0 = arith.constant 0 : i32
    %c0_i32_1 = arith.constant 0 : i32
    return %c0_i32, %c0_i32_0 : i32, i32
  }
  func.func @transform_11(%arg0: i32) -> (i32, i32, i32) {
    %c0_i32 = arith.constant 0 : i32
    %c0_i32_0 = arith.constant 0 : i32
    %c0_i32_1 = arith.constant 0 : i32
    return %arg0, %c0_i32, %c0_i32_0 : i32, i32, i32
  }
}

module attributes {stable_mosaic.version = 11 : i64} {
  func.func @kernel(%arg0: i32, %arg1: memref<2x16x32xf32, #tpu.memory_space<vmem>>, %arg2: memref<32x32xbf16, #tpu.memory_space<vmem>>, %arg3: memref<1x32xf32, #tpu.memory_space<vmem>>, %arg4: memref<32x32xbf16, #tpu.memory_space<vmem>>, %arg5: memref<1x32xf32, #tpu.memory_space<vmem>>, %arg6: memref<16x16xbf16, #tpu.memory_space<vmem>>, %arg7: memref<16x1xf32, #tpu.memory_space<vmem>>, %arg8: memref<16x1xf32, #tpu.memory_space<vmem>>, %arg9: memref<16x1xf32, #tpu.memory_space<vmem>>, %arg10: memref<16x16xbf16, #tpu.memory_space<vmem>>, %arg11: memref<16x1xf32, #tpu.memory_space<vmem>>, %arg12: memref<2x16x32xf32, #tpu.memory_space<vmem>>) attributes {dimension_semantics = [#tpu.dimension_semantics<parallel>], iteration_bounds = array<i64: 2>, scalar_prefetch = 0 : i64, scratch_operands = 0 : i64, tpu.core_type = #tpu.core_type<tc>, window_params = [{transform_indices = @transform_0, window_bounds = array<i64: 2, 16, 32>}, {pipeline_mode = #tpu.pipeline_mode<synchronous>, transform_indices = @transform_1, window_bounds = array<i64: 32, 32>}, {pipeline_mode = #tpu.pipeline_mode<synchronous>, transform_indices = @transform_2, window_bounds = array<i64: 1, 32>}, {pipeline_mode = #tpu.pipeline_mode<synchronous>, transform_indices = @transform_3, window_bounds = array<i64: 32, 32>}, {pipeline_mode = #tpu.pipeline_mode<synchronous>, transform_indices = @transform_4, window_bounds = array<i64: 1, 32>}, {pipeline_mode = #tpu.pipeline_mode<synchronous>, transform_indices = @transform_5, window_bounds = array<i64: 16, 16>}, {pipeline_mode = #tpu.pipeline_mode<synchronous>, transform_indices = @transform_6, window_bounds = array<i64: 16, 1>}, {pipeline_mode = #tpu.pipeline_mode<synchronous>, transform_indices = @transform_7, window_bounds = array<i64: 16, 1>}, {pipeline_mode = #tpu.pipeline_mode<synchronous>, transform_indices = @transform_8, window_bounds = array<i64: 16, 1>}, {pipeline_mode = #tpu.pipeline_mode<synchronous>, transform_indices = @transform_9, window_bounds = array<i64: 16, 16>}, {pipeline_mode = #tpu.pipeline_mode<synchronous>, transform_indices = @transform_10, window_bounds = array<i64: 16, 1>}, {transform_indices = @transform_11, window_bounds = array<i64: 2, 16, 32>}]} {
    %c0 = arith.constant 0 : index
    %c0_0 = arith.constant 0 : index
    %0 = vector.load %arg7[%c0, %c0_0] : memref<16x1xf32, #tpu.memory_space<vmem>>, vector<16x1xf32>
    %1 = vector.shape_cast %0 : vector<16x1xf32> to vector<16x1xf32>
    %2 = vector.broadcast %1 : vector<16x1xf32> to vector<16x32xf32>
    %c0_1 = arith.constant 0 : index
    %c0_2 = arith.constant 0 : index
    %3 = vector.load %arg8[%c0_1, %c0_2] : memref<16x1xf32, #tpu.memory_space<vmem>>, vector<16x1xf32>
    %4 = vector.shape_cast %3 : vector<16x1xf32> to vector<16x1xf32>
    %5 = vector.broadcast %4 : vector<16x1xf32> to vector<16x32xf32>
    %c0_3 = arith.constant 0 : index
    %c0_4 = arith.constant 0 : index
    %6 = vector.load %arg9[%c0_3, %c0_4] : memref<16x1xf32, #tpu.memory_space<vmem>>, vector<16x1xf32>
    %7 = vector.shape_cast %6 : vector<16x1xf32> to vector<16x1xf32>
    %8 = vector.broadcast %7 : vector<16x1xf32> to vector<16x32xf32>
    %c0_5 = arith.constant 0 : index
    %c0_6 = arith.constant 0 : index
    %9 = vector.load %arg11[%c0_5, %c0_6] : memref<16x1xf32, #tpu.memory_space<vmem>>, vector<16x1xf32>
    %10 = vector.shape_cast %9 : vector<16x1xf32> to vector<16x1xf32>
    %11 = vector.broadcast %10 : vector<16x1xf32> to vector<16x32xf32>
    %c0_7 = arith.constant 0 : index
    %c0_8 = arith.constant 0 : index
    %c0_9 = arith.constant 0 : index
    %12 = vector.load %arg1[%c0_7, %c0_8, %c0_9] : memref<2x16x32xf32, #tpu.memory_space<vmem>>, vector<2x16x32xf32>
    %13 = vector.shape_cast %12 : vector<2x16x32xf32> to vector<32x32xf32>
    %14 = arith.truncf %13 : vector<32x32xf32> to vector<32x32xbf16>
    %c0_10 = arith.constant 0 : index
    %c0_11 = arith.constant 0 : index
    %15 = vector.load %arg2[%c0_10, %c0_11] : memref<32x32xbf16, #tpu.memory_space<vmem>>, vector<32x32xbf16>
    %cst = arith.constant dense<0.000000e+00> : vector<32x32xf32>
    %16 = tpu.matmul %14, %15, %cst {dimension_numbers = #tpu.dot_dimension_numbers<[1], [0], [0], [1], [0, 0, 1, 1], [], []>} : vector<32x32xbf16>, vector<32x32xbf16>, vector<32x32xf32> -> vector<32x32xf32>
    %c0_12 = arith.constant 0 : index
    %c0_13 = arith.constant 0 : index
    %17 = vector.load %arg3[%c0_12, %c0_13] : memref<1x32xf32, #tpu.memory_space<vmem>>, vector<1x32xf32>
    %18 = vector.broadcast %17 : vector<1x32xf32> to vector<32x32xf32>
    %19 = arith.addf %16, %18 : vector<32x32xf32>
    %cst_14 = arith.constant 5.000000e-01 : f32
    %20 = vector.broadcast %cst_14 : f32 to vector<32x32xf32>
    %21 = arith.mulf %20, %19 : vector<32x32xf32>
    %cst_15 = arith.constant 0.707106769 : f32
    %22 = vector.broadcast %cst_15 : f32 to vector<32x32xf32>
    %23 = arith.mulf %19, %22 : vector<32x32xf32>
    %24 = math.erf %23 : vector<32x32xf32>
    %cst_16 = arith.constant 1.000000e+00 : f32
    %25 = vector.broadcast %cst_16 : f32 to vector<32x32xf32>
    %26 = arith.addf %25, %24 : vector<32x32xf32>
    %27 = arith.mulf %21, %26 : vector<32x32xf32>
    %28 = arith.truncf %27 : vector<32x32xf32> to vector<32x32xbf16>
    %c0_17 = arith.constant 0 : index
    %c0_18 = arith.constant 0 : index
    %29 = vector.load %arg4[%c0_17, %c0_18] : memref<32x32xbf16, #tpu.memory_space<vmem>>, vector<32x32xbf16>
    %cst_19 = arith.constant dense<0.000000e+00> : vector<32x32xf32>
    %30 = tpu.matmul %28, %29, %cst_19 {dimension_numbers = #tpu.dot_dimension_numbers<[1], [0], [0], [1], [0, 0, 1, 1], [], []>} : vector<32x32xbf16>, vector<32x32xbf16>, vector<32x32xf32> -> vector<32x32xf32>
    %c0_20 = arith.constant 0 : index
    %c0_21 = arith.constant 0 : index
    %31 = vector.load %arg5[%c0_20, %c0_21] : memref<1x32xf32, #tpu.memory_space<vmem>>, vector<1x32xf32>
    %32 = vector.broadcast %31 : vector<1x32xf32> to vector<32x32xf32>
    %33 = arith.addf %30, %32 : vector<32x32xf32>
    %34 = arith.addf %13, %33 : vector<32x32xf32>
    %35 = arith.truncf %34 : vector<32x32xf32> to vector<32x32xbf16>
    %36 = vector.extract_strided_slice %34 {offsets = [0, 0], sizes = [16, 32], strides = [1, 1]} : vector<32x32xf32> to vector<16x32xf32>
    %c0_22 = arith.constant 0 : index
    %c0_23 = arith.constant 0 : index
    %37 = vector.load %arg6[%c0_22, %c0_23] : memref<16x16xbf16, #tpu.memory_space<vmem>>, vector<16x16xbf16>
    %38 = vector.extract_strided_slice %35 {offsets = [0, 0], sizes = [16, 32], strides = [1, 1]} : vector<32x32xbf16> to vector<16x32xbf16>
    %cst_24 = arith.constant dense<0.000000e+00> : vector<16x32xf32>
    %39 = tpu.matmul %37, %38, %cst_24 {dimension_numbers = #tpu.dot_dimension_numbers<[1], [0], [0], [1], [0, 0, 1, 1], [], []>} : vector<16x16xbf16>, vector<16x32xbf16>, vector<16x32xf32> -> vector<16x32xf32>
    %40 = arith.addf %39, %2 : vector<16x32xf32>
    %cst_25 = arith.constant dense<0.000000e+00> : vector<32xf32>
    %41 = vector.multi_reduction <add>, %40, %cst_25 [0] : vector<16x32xf32> to vector<32xf32>
    %42 = vector.shape_cast %41 : vector<32xf32> to vector<1x32xf32>
    %cst_26 = arith.constant 1.600000e+01 : f32
    %43 = vector.broadcast %cst_26 : f32 to vector<1x32xf32>
    %44 = arith.divf %42, %43 : vector<1x32xf32>
    %45 = vector.broadcast %44 : vector<1x32xf32> to vector<16x32xf32>
    %46 = arith.subf %40, %45 : vector<16x32xf32>
    %47 = vector.broadcast %44 : vector<1x32xf32> to vector<16x32xf32>
    %48 = arith.subf %40, %47 : vector<16x32xf32>
    %49 = arith.mulf %46, %48 : vector<16x32xf32>
    %cst_27 = arith.constant dense<0.000000e+00> : vector<32xf32>
    %50 = vector.multi_reduction <add>, %49, %cst_27 [0] : vector<16x32xf32> to vector<32xf32>
    %51 = vector.shape_cast %50 : vector<32xf32> to vector<1x32xf32>
    %cst_28 = arith.constant 1.600000e+01 : f32
    %52 = vector.broadcast %cst_28 : f32 to vector<1x32xf32>
    %53 = arith.divf %51, %52 : vector<1x32xf32>
    %54 = vector.broadcast %44 : vector<1x32xf32> to vector<16x32xf32>
    %55 = arith.subf %40, %54 : vector<16x32xf32>
    %cst_29 = arith.constant 9.99999974E-6 : f32
    %56 = vector.broadcast %cst_29 : f32 to vector<1x32xf32>
    %57 = arith.addf %53, %56 : vector<1x32xf32>
    %58 = math.rsqrt %57 : vector<1x32xf32>
    %59 = vector.broadcast %58 : vector<1x32xf32> to vector<16x32xf32>
    %60 = arith.mulf %55, %59 : vector<16x32xf32>
    %61 = arith.mulf %60, %5 : vector<16x32xf32>
    %62 = arith.addf %61, %8 : vector<16x32xf32>
    %cst_30 = arith.constant 5.000000e-01 : f32
    %63 = vector.broadcast %cst_30 : f32 to vector<16x32xf32>
    %64 = arith.mulf %63, %62 : vector<16x32xf32>
    %cst_31 = arith.constant 0.707106769 : f32
    %65 = vector.broadcast %cst_31 : f32 to vector<16x32xf32>
    %66 = arith.mulf %62, %65 : vector<16x32xf32>
    %67 = math.erf %66 : vector<16x32xf32>
    %cst_32 = arith.constant 1.000000e+00 : f32
    %68 = vector.broadcast %cst_32 : f32 to vector<16x32xf32>
    %69 = arith.addf %68, %67 : vector<16x32xf32>
    %70 = arith.mulf %64, %69 : vector<16x32xf32>
    %c0_33 = arith.constant 0 : index
    %c0_34 = arith.constant 0 : index
    %71 = vector.load %arg10[%c0_33, %c0_34] : memref<16x16xbf16, #tpu.memory_space<vmem>>, vector<16x16xbf16>
    %72 = arith.truncf %70 : vector<16x32xf32> to vector<16x32xbf16>
    %cst_35 = arith.constant dense<0.000000e+00> : vector<16x32xf32>
    %73 = tpu.matmul %71, %72, %cst_35 {dimension_numbers = #tpu.dot_dimension_numbers<[1], [0], [0], [1], [0, 0, 1, 1], [], []>} : vector<16x16xbf16>, vector<16x32xbf16>, vector<16x32xf32> -> vector<16x32xf32>
    %74 = arith.addf %73, %11 : vector<16x32xf32>
    %75 = arith.addf %36, %74 : vector<16x32xf32>
    %c0_36 = arith.constant 0 : index
    %c0_37 = arith.constant 0 : index
    %c0_38 = arith.constant 0 : index
    %76 = vector.load %arg12[%c0_36, %c0_37, %c0_38] : memref<2x16x32xf32, #tpu.memory_space<vmem>>, vector<1x16x32xf32>
    %77 = vector.shape_cast %76 : vector<1x16x32xf32> to vector<16x32xf32>
    %78 = vector.shape_cast %75 : vector<16x32xf32> to vector<1x16x32xf32>
    tpu.vector_store %arg12[%c0_36, %c0_37, %c0_38], %78 {strides = array<i32>} : memref<2x16x32xf32, #tpu.memory_space<vmem>>, vector<1x16x32xf32>,
    %79 = vector.extract_strided_slice %34 {offsets = [16, 0], sizes = [16, 32], strides = [1, 1]} : vector<32x32xf32> to vector<16x32xf32>
    %c0_39 = arith.constant 0 : index
    %c0_40 = arith.constant 0 : index
    %80 = vector.load %arg6[%c0_39, %c0_40] : memref<16x16xbf16, #tpu.memory_space<vmem>>, vector<16x16xbf16>
    %81 = vector.extract_strided_slice %35 {offsets = [16, 0], sizes = [16, 32], strides = [1, 1]} : vector<32x32xbf16> to vector<16x32xbf16>
    %cst_41 = arith.constant dense<0.000000e+00> : vector<16x32xf32>
    %82 = tpu.matmul %80, %81, %cst_41 {dimension_numbers = #tpu.dot_dimension_numbers<[1], [0], [0], [1], [0, 0, 1, 1], [], []>} : vector<16x16xbf16>, vector<16x32xbf16>, vector<16x32xf32> -> vector<16x32xf32>
    %83 = arith.addf %82, %2 : vector<16x32xf32>
    %cst_42 = arith.constant dense<0.000000e+00> : vector<32xf32>
    %84 = vector.multi_reduction <add>, %83, %cst_42 [0] : vector<16x32xf32> to vector<32xf32>
    %85 = vector.shape_cast %84 : vector<32xf32> to vector<1x32xf32>
    %cst_43 = arith.constant 1.600000e+01 : f32
    %86 = vector.broadcast %cst_43 : f32 to vector<1x32xf32>
    %87 = arith.divf %85, %86 : vector<1x32xf32>
    %88 = vector.broadcast %87 : vector<1x32xf32> to vector<16x32xf32>
    %89 = arith.subf %83, %88 : vector<16x32xf32>
    %90 = vector.broadcast %87 : vector<1x32xf32> to vector<16x32xf32>
    %91 = arith.subf %83, %90 : vector<16x32xf32>
    %92 = arith.mulf %89, %91 : vector<16x32xf32>
    %cst_44 = arith.constant dense<0.000000e+00> : vector<32xf32>
    %93 = vector.multi_reduction <add>, %92, %cst_44 [0] : vector<16x32xf32> to vector<32xf32>
    %94 = vector.shape_cast %93 : vector<32xf32> to vector<1x32xf32>
    %cst_45 = arith.constant 1.600000e+01 : f32
    %95 = vector.broadcast %cst_45 : f32 to vector<1x32xf32>
    %96 = arith.divf %94, %95 : vector<1x32xf32>
    %97 = vector.broadcast %87 : vector<1x32xf32> to vector<16x32xf32>
    %98 = arith.subf %83, %97 : vector<16x32xf32>
    %cst_46 = arith.constant 9.99999974E-6 : f32
    %99 = vector.broadcast %cst_46 : f32 to vector<1x32xf32>
    %100 = arith.addf %96, %99 : vector<1x32xf32>
    %101 = math.rsqrt %100 : vector<1x32xf32>
    %102 = vector.broadcast %101 : vector<1x32xf32> to vector<16x32xf32>
    %103 = arith.mulf %98, %102 : vector<16x32xf32>
    %104 = arith.mulf %103, %5 : vector<16x32xf32>
    %105 = arith.addf %104, %8 : vector<16x32xf32>
    %cst_47 = arith.constant 5.000000e-01 : f32
    %106 = vector.broadcast %cst_47 : f32 to vector<16x32xf32>
    %107 = arith.mulf %106, %105 : vector<16x32xf32>
    %cst_48 = arith.constant 0.707106769 : f32
    %108 = vector.broadcast %cst_48 : f32 to vector<16x32xf32>
    %109 = arith.mulf %105, %108 : vector<16x32xf32>
    %110 = math.erf %109 : vector<16x32xf32>
    %cst_49 = arith.constant 1.000000e+00 : f32
    %111 = vector.broadcast %cst_49 : f32 to vector<16x32xf32>
    %112 = arith.addf %111, %110 : vector<16x32xf32>
    %113 = arith.mulf %107, %112 : vector<16x32xf32>
    %c0_50 = arith.constant 0 : index
    %c0_51 = arith.constant 0 : index
    %114 = vector.load %arg10[%c0_50, %c0_51] : memref<16x16xbf16, #tpu.memory_space<vmem>>, vector<16x16xbf16>
    %115 = arith.truncf %113 : vector<16x32xf32> to vector<16x32xbf16>
    %cst_52 = arith.constant dense<0.000000e+00> : vector<16x32xf32>
    %116 = tpu.matmul %114, %115, %cst_52 {dimension_numbers = #tpu.dot_dimension_numbers<[1], [0], [0], [1], [0, 0, 1, 1], [], []>} : vector<16x16xbf16>, vector<16x32xbf16>, vector<16x32xf32> -> vector<16x32xf32>
    %117 = arith.addf %116, %11 : vector<16x32xf32>
    %118 = arith.addf %79, %117 : vector<16x32xf32>
    %c1 = arith.constant 1 : index
    %c0_53 = arith.constant 0 : index
    %c0_54 = arith.constant 0 : index
    %119 = vector.load %arg12[%c1, %c0_53, %c0_54] : memref<2x16x32xf32, #tpu.memory_space<vmem>>, vector<1x16x32xf32>
    %120 = vector.shape_cast %119 : vector<1x16x32xf32> to vector<16x32xf32>
    %121 = vector.shape_cast %118 : vector<16x32xf32> to vector<1x16x32xf32>
    tpu.vector_store %arg12[%c1, %c0_53, %c0_54], %121 {strides = array<i32>} : memref<2x16x32xf32, #tpu.memory_space<vmem>>, vector<1x16x32xf32>,
    return
  }
  func.func @transform_0(%arg0: i32) -> (i32, i32, i32) {
    %c0_i32 = arith.constant 0 : i32
    %c0_i32_0 = arith.constant 0 : i32
    %c0_i32_1 = arith.constant 0 : i32
    return %arg0, %c0_i32, %c0_i32_0 : i32, i32, i32
  }
  func.func @transform_1(%arg0: i32) -> (i32, i32) {
    %c0_i32 = arith.constant 0 : i32
    %c0_i32_0 = arith.constant 0 : i32
    %c0_i32_1 = arith.constant 0 : i32
    return %c0_i32, %c0_i32_0 : i32, i32
  }
  func.func @transform_2(%arg0: i32) -> (i32, i32) {
    %c0_i32 = arith.constant 0 : i32
    %c0_i32_0 = arith.constant 0 : i32
    %c0_i32_1 = arith.constant 0 : i32
    return %c0_i32, %c0_i32_0 : i32, i32
  }
  func.func @transform_3(%arg0: i32) -> (i32, i32) {
    %c0_i32 = arith.constant 0 : i32
    %c0_i32_0 = arith.constant 0 : i32
    %c0_i32_1 = arith.constant 0 : i32
    return %c0_i32, %c0_i32_0 : i32, i32
  }
  func.func @transform_4(%arg0: i32) -> (i32, i32) {
    %c0_i32 = arith.constant 0 : i32
    %c0_i32_0 = arith.constant 0 : i32
    %c0_i32_1 = arith.constant 0 : i32
    return %c0_i32, %c0_i32_0 : i32, i32
  }
  func.func @transform_5(%arg0: i32) -> (i32, i32) {
    %c0_i32 = arith.constant 0 : i32
    %c0_i32_0 = arith.constant 0 : i32
    %c0_i32_1 = arith.constant 0 : i32
    return %c0_i32, %c0_i32_0 : i32, i32
  }
  func.func @transform_6(%arg0: i32) -> (i32, i32) {
    %c0_i32 = arith.constant 0 : i32
    %c0_i32_0 = arith.constant 0 : i32
    %c0_i32_1 = arith.constant 0 : i32
    return %c0_i32, %c0_i32_0 : i32, i32
  }
  func.func @transform_7(%arg0: i32) -> (i32, i32) {
    %c0_i32 = arith.constant 0 : i32
    %c0_i32_0 = arith.constant 0 : i32
    %c0_i32_1 = arith.constant 0 : i32
    return %c0_i32, %c0_i32_0 : i32, i32
  }
  func.func @transform_8(%arg0: i32) -> (i32, i32) {
    %c0_i32 = arith.constant 0 : i32
    %c0_i32_0 = arith.constant 0 : i32
    %c0_i32_1 = arith.constant 0 : i32
    return %c0_i32, %c0_i32_0 : i32, i32
  }
  func.func @transform_9(%arg0: i32) -> (i32, i32) {
    %c0_i32 = arith.constant 0 : i32
    %c0_i32_0 = arith.constant 0 : i32
    %c0_i32_1 = arith.constant 0 : i32
    return %c0_i32, %c0_i32_0 : i32, i32
  }
  func.func @transform_10(%arg0: i32) -> (i32, i32) {
    %c0_i32 = arith.constant 0 : i32
    %c0_i32_0 = arith.constant 0 : i32
    %c0_i32_1 = arith.constant 0 : i32
    return %c0_i32, %c0_i32_0 : i32, i32
  }
  func.func @transform_11(%arg0: i32) -> (i32, i32, i32) {
    %c0_i32 = arith.constant 0 : i32
    %c0_i32_0 = arith.constant 0 : i32
    %c0_i32_1 = arith.constant 0 : i32
    return %arg0, %c0_i32, %c0_i32_0 : i32, i32, i32
  }
}

</mosaic_0001>

<llo_original>
// kernel: mlp_mixer_encoder_layer.1
$region0: #{mlp_mixer_encoder_layer.1}
  #allocation0 [shape = 'u32[]', space=smem, size = 0x4, offset = 0x4, fixed_abs, tag = 'smem constant byte address 0x4 - core index']
  #allocation1 [shape = 'u32[144,128]{1,0:T(1,128)}', space=vmem, size = 0x12000, scoped, tag = 'internal scratch']
  %s0 = inlined_call_operand.vmem [shape: f32[4,16,32], index: 0, kind: input, shape index: {}]
  %s1 = inlined_call_operand.vmem [shape: bf16[32,32], index: 1, kind: input, shape index: {}]
  %s2 = inlined_call_operand.vmem [shape: f32[1,32], index: 2, kind: input, shape index: {}]
  %s3 = inlined_call_operand.vmem [shape: bf16[32,32], index: 3, kind: input, shape index: {}]
  %s4 = inlined_call_operand.vmem [shape: f32[1,32], index: 4, kind: input, shape index: {}]
  %s5 = inlined_call_operand.vmem [shape: bf16[16,16], index: 5, kind: input, shape index: {}]
  %s6 = inlined_call_operand.vmem [shape: f32[16,1], index: 6, kind: input, shape index: {}]
  %s7 = inlined_call_operand.vmem [shape: f32[16,1], index: 7, kind: input, shape index: {}]
  %s8 = inlined_call_operand.vmem [shape: f32[16,1], index: 8, kind: input, shape index: {}]
  %s9 = inlined_call_operand.vmem [shape: bf16[16,16], index: 9, kind: input, shape index: {}]
  %s10 = inlined_call_operand.vmem [shape: f32[16,1], index: 10, kind: input, shape index: {}]
  %s11 = inlined_call_operand.hbm [shape: f32[4,16,32], index: 11, kind: output, shape index: {}]
  %s12 = sld [smem:[#allocation0]]
  $region77: #{mlp_mixer_encoder_layer.1} parent=0
    _
  %s14 = ssub.s32 1, %s12
  %s15 = scalar_select 0, %s14, %s12
  $region1: #{mlp_mixer_encoder_layer.1} parent=0
    #allocation2 [shape = 'u8[32768]{0}', space=vmem, size = 0x8000, scoped, tag = 'output window, operand 0']
    #allocation3 [shape = 's32[2]{0}', space=sflag, size = 0x8, scoped, tag = 'scoped memory for mlp_mixer_encoder_layer.1']
    %16 = vsyncpa [#allocation3], 0
    %s17 = scalar_lea.sflag [#allocation3], 1
    %18 = vsyncpa %s17, 0
    loop: start=0, step=1, limit=4
    $region2: #{mlp_mixer_encoder_layer.1} parent=1 // loop_pre_header
      _
    $region3: #{mlp_mixer_encoder_layer.1} parent=1 // loop_header
      %s20 = sphi 0, %s24
      %p21 = scmp.ge.s32.totalorder %s20, 4
      %s30 = sphi 0, %s32
      %s33 = sphi 0, %s30
      %s34 = sphi 0, %s33
      %s50 = sphi 0, %s34
      %s54 = sphi 0, %s54
      %s56 = sphi 0, %s54
      %s57 = sphi 0, %s56
      %s71 = sphi 0, %s57
      %s75 = sphi 0, %s75
      %s77 = sphi 0, %s75
      %s78 = sphi 0, %s77
      %s92 = sphi 0, %s78
      %s96 = sphi 0, %s96
      %s98 = sphi 0, %s96
      %s99 = sphi 0, %s98
      %s113 = sphi 0, %s99
      %s117 = sphi 0, %s117
      %s119 = sphi 0, %s117
      %s120 = sphi 0, %s119
      %s134 = sphi 0, %s120
      %s138 = sphi 0, %s138
      %s140 = sphi 0, %s138
      %s141 = sphi 0, %s140
      %s155 = sphi 0, %s141
      %s159 = sphi 0, %s159
      %s161 = sphi 0, %s159
      %s162 = sphi 0, %s161
      %s176 = sphi 0, %s162
      %s180 = sphi 0, %s180
      %s182 = sphi 0, %s180
      %s183 = sphi 0, %s182
      %s197 = sphi 0, %s183
      %s201 = sphi 0, %s201
      %s203 = sphi 0, %s201
      %s204 = sphi 0, %s203
      %s218 = sphi 0, %s204
      %s222 = sphi 0, %s222
      %s224 = sphi 0, %s222
      %s225 = sphi 0, %s224
      %s239 = sphi 0, %s225
      %s243 = sphi 0, %s243
      %s245 = sphi 0, %s243
      %s246 = sphi 0, %s245
      %s260 = sphi 0, %s246
      %s266 = sphi 0, %s268
      %s269 = sphi 0, %s266
      %s270 = sphi 0, %s269
      %s286 = sphi 0, %s270
    $region4: #{mlp_mixer_encoder_layer.1} parent=1 // loop_header_branch
      %23 = sbr.rel (%p21) target = $region8
    $region5: #{mlp_mixer_encoder_layer.1} parent=1 // loop_body
      %s25 = ssub.s32 %s20, 1
      %s26 = ssub.s32 %s20, 2
      %s27 = sadd.s32 %s20, 1
      %s28 = ssub.s32 %s20, %s27
      %p29 = scmp.eq.s32.totalorder %s28, 0
      %s31 = sadd.s32 %s30, 1
      %s32 = scalar_select %p29, %s30, %s31
      %p35 = pneg %p29
      %p36 = scmp.eq.s32.totalorder %s20, 1
      %p37 = por %p35, %p36
      %p38 = scmp.ne.s32.totalorder %s30, %s33
      %p39 = scmp.eq.s32.totalorder %s20, 0
      %p40 = por %p38, %p39
      %p41 = scmp.ne.s32.totalorder %s30, %s33
      %p42 = scmp.eq.s32.totalorder %s25, 1
      %p43 = por %p41, %p42
      %p44 = scmp.ne.s32.totalorder %s33, %s34
      %p45 = scmp.eq.s32.totalorder %s25, 0
      %p46 = por %p44, %p45
      %p47 = scmp.ne.s32.totalorder %s33, %s34
      %p48 = scmp.eq.s32.totalorder %s26, 1
      %p49 = por %p47, %p48
      %p51 = scmp.ne.s32.totalorder %s34, %s50
      %p52 = scmp.eq.s32.totalorder %s26, 0
      %p53 = por %p51, %p52
      %s55 = sadd.s32 %s54, 1
      %p58 = scmp.eq.s32.totalorder %s20, 1
      %p59 = scmp.ne.s32.totalorder %s54, %s56
      %p60 = scmp.eq.s32.totalorder %s20, 0
      %p61 = por %p59, %p60
      %p62 = scmp.ne.s32.totalorder %s54, %s56
      %p63 = scmp.eq.s32.totalorder %s25, 1
      %p64 = por %p62, %p63
      %p65 = scmp.ne.s32.totalorder %s56, %s57
      %p66 = scmp.eq.s32.totalorder %s25, 0
      %p67 = por %p65, %p66
      %p68 = scmp.ne.s32.totalorder %s56, %s57
      %p69 = scmp.eq.s32.totalorder %s26, 1
      %p70 = por %p68, %p69
      %p72 = scmp.ne.s32.totalorder %s57, %s71
      %p73 = scmp.eq.s32.totalorder %s26, 0
      %p74 = por %p72, %p73
      %s76 = sadd.s32 %s75, 1
      %p79 = scmp.eq.s32.totalorder %s20, 1
      %p80 = scmp.ne.s32.totalorder %s75, %s77
      %p81 = scmp.eq.s32.totalorder %s20, 0
      %p82 = por %p80, %p81
      %p83 = scmp.ne.s32.totalorder %s75, %s77
      %p84 = scmp.eq.s32.totalorder %s25, 1
      %p85 = por %p83, %p84
      %p86 = scmp.ne.s32.totalorder %s77, %s78
      %p87 = scmp.eq.s32.totalorder %s25, 0
      %p88 = por %p86, %p87
      %p89 = scmp.ne.s32.totalorder %s77, %s78
      %p90 = scmp.eq.s32.totalorder %s26, 1
      %p91 = por %p89, %p90
      %p93 = scmp.ne.s32.totalorder %s78, %s92
      %p94 = scmp.eq.s32.totalorder %s26, 0
      %p95 = por %p93, %p94
      %s97 = sadd.s32 %s96, 1
      %p100 = scmp.eq.s32.totalorder %s20, 1
      %p101 = scmp.ne.s32.totalorder %s96, %s98
      %p102 = scmp.eq.s32.totalorder %s20, 0
      %p103 = por %p101, %p102
      %p104 = scmp.ne.s32.totalorder %s96, %s98
      %p105 = scmp.eq.s32.totalorder %s25, 1
      %p106 = por %p104, %p105
      %p107 = scmp.ne.s32.totalorder %s98, %s99
      %p108 = scmp.eq.s32.totalorder %s25, 0
      %p109 = por %p107, %p108
      %p110 = scmp.ne.s32.totalorder %s98, %s99
      %p111 = scmp.eq.s32.totalorder %s26, 1
      %p112 = por %p110, %p111
      %p114 = scmp.ne.s32.totalorder %s99, %s113
      %p115 = scmp.eq.s32.totalorder %s26, 0
      %p116 = por %p114, %p115
      %s118 = sadd.s32 %s117, 1
      %p121 = scmp.eq.s32.totalorder %s20, 1
      %p122 = scmp.ne.s32.totalorder %s117, %s119
      %p123 = scmp.eq.s32.totalorder %s20, 0
      %p124 = por %p122, %p123
      %p125 = scmp.ne.s32.totalorder %s117, %s119
      %p126 = scmp.eq.s32.totalorder %s25, 1
      %p127 = por %p125, %p126
      %p128 = scmp.ne.s32.totalorder %s119, %s120
      %p129 = scmp.eq.s32.totalorder %s25, 0
      %p130 = por %p128, %p129
      %p131 = scmp.ne.s32.totalorder %s119, %s120
      %p132 = scmp.eq.s32.totalorder %s26, 1
      %p133 = por %p131, %p132
      %p135 = scmp.ne.s32.totalorder %s120, %s134
      %p136 = scmp.eq.s32.totalorder %s26, 0
      %p137 = por %p135, %p136
      %s139 = sadd.s32 %s138, 1
      %p142 = scmp.eq.s32.totalorder %s20, 1
      %p143 = scmp.ne.s32.totalorder %s138, %s140
      %p144 = scmp.eq.s32.totalorder %s20, 0
      %p145 = por %p143, %p144
      %p146 = scmp.ne.s32.totalorder %s138, %s140
      %p147 = scmp.eq.s32.totalorder %s25, 1
      %p148 = por %p146, %p147
      %p149 = scmp.ne.s32.totalorder %s140, %s141
      %p150 = scmp.eq.s32.totalorder %s25, 0
      %p151 = por %p149, %p150
      %p152 = scmp.ne.s32.totalorder %s140, %s141
      %p153 = scmp.eq.s32.totalorder %s26, 1
      %p154 = por %p152, %p153
      %p156 = scmp.ne.s32.totalorder %s141, %s155
      %p157 = scmp.eq.s32.totalorder %s26, 0
      %p158 = por %p156, %p157
      %s160 = sadd.s32 %s159, 1
      %p163 = scmp.eq.s32.totalorder %s20, 1
      %p164 = scmp.ne.s32.totalorder %s159, %s161
      %p165 = scmp.eq.s32.totalorder %s20, 0
      %p166 = por %p164, %p165
      %p167 = scmp.ne.s32.totalorder %s159, %s161
      %p168 = scmp.eq.s32.totalorder %s25, 1
      %p169 = por %p167, %p168
      %p170 = scmp.ne.s32.totalorder %s161, %s162
      %p171 = scmp.eq.s32.totalorder %s25, 0
      %p172 = por %p170, %p171
      %p173 = scmp.ne.s32.totalorder %s161, %s162
      %p174 = scmp.eq.s32.totalorder %s26, 1
      %p175 = por %p173, %p174
      %p177 = scmp.ne.s32.totalorder %s162, %s176
      %p178 = scmp.eq.s32.totalorder %s26, 0
      %p179 = por %p177, %p178
      %s181 = sadd.s32 %s180, 1
      %p184 = scmp.eq.s32.totalorder %s20, 1
      %p185 = scmp.ne.s32.totalorder %s180, %s182
      %p186 = scmp.eq.s32.totalorder %s20, 0
      %p187 = por %p185, %p186
      %p188 = scmp.ne.s32.totalorder %s180, %s182
      %p189 = scmp.eq.s32.totalorder %s25, 1
      %p190 = por %p188, %p189
      %p191 = scmp.ne.s32.totalorder %s182, %s183
      %p192 = scmp.eq.s32.totalorder %s25, 0
      %p193 = por %p191, %p192
      %p194 = scmp.ne.s32.totalorder %s182, %s183
      %p195 = scmp.eq.s32.totalorder %s26, 1
      %p196 = por %p194, %p195
      %p198 = scmp.ne.s32.totalorder %s183, %s197
      %p199 = scmp.eq.s32.totalorder %s26, 0
      %p200 = por %p198, %p199
      %s202 = sadd.s32 %s201, 1
      %p205 = scmp.eq.s32.totalorder %s20, 1
      %p206 = scmp.ne.s32.totalorder %s201, %s203
      %p207 = scmp.eq.s32.totalorder %s20, 0
      %p208 = por %p206, %p207
      %p209 = scmp.ne.s32.totalorder %s201, %s203
      %p210 = scmp.eq.s32.totalorder %s25, 1
      %p211 = por %p209, %p210
      %p212 = scmp.ne.s32.totalorder %s203, %s204
      %p213 = scmp.eq.s32.totalorder %s25, 0
      %p214 = por %p212, %p213
      %p215 = scmp.ne.s32.totalorder %s203, %s204
      %p216 = scmp.eq.s32.totalorder %s26, 1
      %p217 = por %p215, %p216
      %p219 = scmp.ne.s32.totalorder %s204, %s218
      %p220 = scmp.eq.s32.totalorder %s26, 0
      %p221 = por %p219, %p220
      %s223 = sadd.s32 %s222, 1
      %p226 = scmp.eq.s32.totalorder %s20, 1
      %p227 = scmp.ne.s32.totalorder %s222, %s224
      %p228 = scmp.eq.s32.totalorder %s20, 0
      %p229 = por %p227, %p228
      %p230 = scmp.ne.s32.totalorder %s222, %s224
      %p231 = scmp.eq.s32.totalorder %s25, 1
      %p232 = por %p230, %p231
      %p233 = scmp.ne.s32.totalorder %s224, %s225
      %p234 = scmp.eq.s32.totalorder %s25, 0
      %p235 = por %p233, %p234
      %p236 = scmp.ne.s32.totalorder %s224, %s225
      %p237 = scmp.eq.s32.totalorder %s26, 1
      %p238 = por %p236, %p237
      %p240 = scmp.ne.s32.totalorder %s225, %s239
      %p241 = scmp.eq.s32.totalorder %s26, 0
      %p242 = por %p240, %p241
      %s244 = sadd.s32 %s243, 1
      %p247 = scmp.eq.s32.totalorder %s20, 1
      %p248 = scmp.ne.s32.totalorder %s243, %s245
      %p249 = scmp.eq.s32.totalorder %s20, 0
      %p250 = por %p248, %p249
      %p251 = scmp.ne.s32.totalorder %s243, %s245
      %p252 = scmp.eq.s32.totalorder %s25, 1
      %p253 = por %p251, %p252
      %p254 = scmp.ne.s32.totalorder %s245, %s246
      %p255 = scmp.eq.s32.totalorder %s25, 0
      %p256 = por %p254, %p255
      %p257 = scmp.ne.s32.totalorder %s245, %s246
      %p258 = scmp.eq.s32.totalorder %s26, 1
      %p259 = por %p257, %p258
      %p261 = scmp.ne.s32.totalorder %s246, %s260
      %p262 = scmp.eq.s32.totalorder %s26, 0
      %p263 = por %p261, %p262
      %s264 = ssub.s32 %s20, %s27
      %p265 = scmp.eq.s32.totalorder %s264, 0
      %s267 = sadd.s32 %s266, 1
      %s268 = scalar_select %p265, %s266, %s267
      %p271 = pneg %p265
      %p272 = scmp.eq.s32.totalorder %s20, 1
      %p273 = por %p271, %p272
      %p274 = scmp.ne.s32.totalorder %s266, %s269
      %p275 = scmp.eq.s32.totalorder %s20, 0
      %p276 = por %p274, %p275
      %p277 = scmp.ne.s32.totalorder %s266, %s269
      %p278 = scmp.eq.s32.totalorder %s25, 1
      %p279 = por %p277, %p278
      %p280 = scmp.ne.s32.totalorder %s269, %s270
      %p281 = scmp.eq.s32.totalorder %s25, 0
      %p282 = por %p280, %p281
      %p283 = scmp.ne.s32.totalorder %s269, %s270
      %p284 = scmp.eq.s32.totalorder %s26, 1
      %p285 = por %p283, %p284
      %p287 = scmp.ne.s32.totalorder %s270, %s286
      %p288 = scmp.eq.s32.totalorder %s26, 0
      %p289 = por %p287, %p288
      %p290 = scmp.le.s32.totalorder 1, %s20
      %p291 = scmp.lt.s32.totalorder %s20, 3
      %p292 = pnand %p290, %p291
      %p293 = pneg %p292
      // Predicated region
      $region9: #{mlp_mixer_encoder_layer.1} parent=5 // pred_check
        _
      $region10: #{mlp_mixer_encoder_layer.1} parent=5 // pred_check_branch
        %295 = sbr.rel (%p292) target = $region12
      $region11: #{mlp_mixer_encoder_layer.1} parent=5 // pred_region
        %s296 = ssub.s32 %s20, 1
        // Predicated region
        $region13: #{mlp_mixer_encoder_layer.1} parent=11 // pred_check
          %p297 = pneg %p67
        $region14: #{mlp_mixer_encoder_layer.1} parent=11 // pred_check_branch
          %299 = sbr.rel (%p297) target = $region16
        $region15: #{mlp_mixer_encoder_layer.1} parent=11 // pred_region
          _
        $region16: #{mlp_mixer_encoder_layer.1} parent=11 // pred_fallthru
          _
        // Predicated region
        $region17: #{mlp_mixer_encoder_layer.1} parent=11 // pred_check
          %p300 = pneg %p88
        $region18: #{mlp_mixer_encoder_layer.1} parent=11 // pred_check_branch
          %302 = sbr.rel (%p300) target = $region20
        $region19: #{mlp_mixer_encoder_layer.1} parent=11 // pred_region
          _
        $region20: #{mlp_mixer_encoder_layer.1} parent=11 // pred_fallthru
          _
        // Predicated region
        $region21: #{mlp_mixer_encoder_layer.1} parent=11 // pred_check
          %p303 = pneg %p109
        $region22: #{mlp_mixer_encoder_layer.1} parent=11 // pred_check_branch
          %305 = sbr.rel (%p303) target = $region24
        $region23: #{mlp_mixer_encoder_layer.1} parent=11 // pred_region
          _
        $region24: #{mlp_mixer_encoder_layer.1} parent=11 // pred_fallthru
          _
        // Predicated region
        $region25: #{mlp_mixer_encoder_layer.1} parent=11 // pred_check
          %p306 = pneg %p130
        $region26: #{mlp_mixer_encoder_layer.1} parent=11 // pred_check_branch
          %308 = sbr.rel (%p306) target = $region28
        $region27: #{mlp_mixer_encoder_layer.1} parent=11 // pred_region
          _
        $region28: #{mlp_mixer_encoder_layer.1} parent=11 // pred_fallthru
          _
        // Predicated region
        $region29: #{mlp_mixer_encoder_layer.1} parent=11 // pred_check
          %p309 = pneg %p151
        $region30: #{mlp_mixer_encoder_layer.1} parent=11 // pred_check_branch
          %311 = sbr.rel (%p309) target = $region32
        $region31: #{mlp_mixer_encoder_layer.1} parent=11 // pred_region
          _
        $region32: #{mlp_mixer_encoder_layer.1} parent=11 // pred_fallthru
          _
        // Predicated region
        $region33: #{mlp_mixer_encoder_layer.1} parent=11 // pred_check
          %p312 = pneg %p172
        $region34: #{mlp_mixer_encoder_layer.1} parent=11 // pred_check_branch
          %314 = sbr.rel (%p312) target = $region36
        $region35: #{mlp_mixer_encoder_layer.1} parent=11 // pred_region
          _
        $region36: #{mlp_mixer_encoder_layer.1} parent=11 // pred_fallthru
          _
        // Predicated region
        $region37: #{mlp_mixer_encoder_layer.1} parent=11 // pred_check
          %p315 = pneg %p193
        $region38: #{mlp_mixer_encoder_layer.1} parent=11 // pred_check_branch
          %317 = sbr.rel (%p315) target = $region40
        $region39: #{mlp_mixer_encoder_layer.1} parent=11 // pred_region
          _
        $region40: #{mlp_mixer_encoder_layer.1} parent=11 // pred_fallthru
          _
        // Predicated region
        $region41: #{mlp_mixer_encoder_layer.1} parent=11 // pred_check
          %p318 = pneg %p214
        $region42: #{mlp_mixer_encoder_layer.1} parent=11 // pred_check_branch
          %320 = sbr.rel (%p318) target = $region44
        $region43: #{mlp_mixer_encoder_layer.1} parent=11 // pred_region
          _
        $region44: #{mlp_mixer_encoder_layer.1} parent=11 // pred_fallthru
          _
        // Predicated region
        $region45: #{mlp_mixer_encoder_layer.1} parent=11 // pred_check
          %p321 = pneg %p235
        $region46: #{mlp_mixer_encoder_layer.1} parent=11 // pred_check_branch
          %323 = sbr.rel (%p321) target = $region48
        $region47: #{mlp_mixer_encoder_layer.1} parent=11 // pred_region
          _
        $region48: #{mlp_mixer_encoder_layer.1} parent=11 // pred_fallthru
          _
        // Predicated region
        $region49: #{mlp_mixer_encoder_layer.1} parent=11 // pred_check
          %p324 = pneg %p256
        $region50: #{mlp_mixer_encoder_layer.1} parent=11 // pred_check_branch
          %326 = sbr.rel (%p324) target = $region52
        $region51: #{mlp_mixer_encoder_layer.1} parent=11 // pred_region
          _
        $region52: #{mlp_mixer_encoder_layer.1} parent=11 // pred_fallthru
          _
      $region12: #{mlp_mixer_encoder_layer.1} parent=5 // pred_fallthru
        _
      %p327 = scmp.lt.s32.totalorder %s20, 2
      // Predicated region
      $region53: #{mlp_mixer_encoder_layer.1} parent=5 // pred_check
        %p328 = pneg %p327
      $region54: #{mlp_mixer_encoder_layer.1} parent=5 // pred_check_branch
        %330 = sbr.rel (%p328) target = $region56
      $region55: #{mlp_mixer_encoder_layer.1} parent=5 // pred_region
        // Predicated region
        $region57: #{mlp_mixer_encoder_layer.1} parent=55 // pred_check
          %p331 = pneg %p40
        $region58: #{mlp_mixer_encoder_layer.1} parent=55 // pred_check_branch
          %333 = sbr.rel (%p331) target = $region60
        $region59: #{mlp_mixer_encoder_layer.1} parent=55 // pred_region
          %s334 = smul.u32 2, %s20
          %p335 = scmp.lt.s32.totalorder %s334, 3
          %s336 = scalar_select %p335, %s334, 3
          %s337 = smul.addr %s336, 2
          %s338 = smul.addr %s337, 8
          %s339 = scalar_lea.vmem %s0, %s338
          %s340 = smul.u32 2, %s20
        $region60: #{mlp_mixer_encoder_layer.1} parent=55 // pred_fallthru
          _
      $region56: #{mlp_mixer_encoder_layer.1} parent=5 // pred_fallthru
        _
      %p341 = scmp.le.s32.totalorder 1, %s20
      %p342 = scmp.lt.s32.totalorder %s20, 3
      %p343 = pnand %p341, %p342
      %p344 = pneg %p343
      // Predicated region
      $region61: #{mlp_mixer_encoder_layer.1} parent=5 // pred_check
        _
      $region62: #{mlp_mixer_encoder_layer.1} parent=5 // pred_check_branch
        %346 = sbr.rel (%p343) target = $region64
      $region63: #{mlp_mixer_encoder_layer.1} parent=5 // pred_region
        %s347 = ssub.s32 %s20, 1
        %s348 = smul.u32 2, %s25
        %p349 = scmp.lt.s32.totalorder %s348, 3
        %s350 = scalar_select %p349, %s348, 3
        %s351 = smul.addr %s350, 2
        %s352 = smul.addr %s351, 8
        %s353 = scalar_lea.vmem %s0, %s352
        %p354 = pneg %p46
        %p355 = pneg %p43
        %p356 = pneg %p67
        %p357 = pneg %p64
        %p358 = pneg %p88
        %p359 = pneg %p85
        %p360 = pneg %p109
        %p361 = pneg %p106
        %p362 = pneg %p130
        %p363 = pneg %p127
        %p364 = pneg %p151
        %p365 = pneg %p148
        %p366 = pneg %p172
        %p367 = pneg %p169
        %p368 = pneg %p193
        %p369 = pneg %p190
        %p370 = pneg %p214
        %p371 = pneg %p211
        %p372 = pneg %p235
        %p373 = pneg %p232
        %p374 = pneg %p256
        %p375 = pneg %p253
        %p376 = pneg %p282
        %p377 = pneg %p279
        %s378 = sand.u32 %s269, 1
        %s379 = scalar_lea.sflag [#allocation3], %s378
        %s380 = sand.u32 %s269, 1
        %s381 = smul.addr %s380, 32
        %s382 = scalar_lea.vmem [#allocation2], %s381
        %s383 = smul.u32 2, %s25
        %p384 = scmp.lt.s32.totalorder %s383, 3
        %s385 = scalar_select %p384, %s383, 3
        %s386 = smul.addr %s385, 2
        %s387 = smul.addr %s386, 8
        %s388 = scalar_lea.vmem %s0, %s387
        %s389 = smul.u32 2, %s25
        %s390 = smul.u32 2, %s25
        %v392 = vld [vmem:[%s6] sm:$0xff]
        %v393 = vld [vmem:[%s6 + $0x8] sm:$0xff]
        %395 = vset.pattern.permute.xlu0 0
        %396 = vperm.xlu0 %395, %v392
        %v397 = vpop.permute.xlu0 %396
        %400 = vset.pattern.permute.xlu0 0
        %401 = vperm.xlu0 %400, %v393
        %v402 = vpop.permute.xlu0 %401
        %v404 = vld [vmem:[%s7] sm:$0xff]
        %v405 = vld [vmem:[%s7 + $0x8] sm:$0xff]
        %407 = vset.pattern.permute.xlu0 0
        %408 = vperm.xlu0 %407, %v404
        %v409 = vpop.permute.xlu0 %408
        %412 = vset.pattern.permute.xlu0 0
        %413 = vperm.xlu0 %412, %v405
        %v414 = vpop.permute.xlu0 %413
        %v416 = vld [vmem:[%s8] sm:$0xff]
        %v417 = vld [vmem:[%s8 + $0x8] sm:$0xff]
        %419 = vset.pattern.permute.xlu0 0
        %420 = vperm.xlu0 %419, %v416
        %v421 = vpop.permute.xlu0 %420
        %424 = vset.pattern.permute.xlu0 0
        %425 = vperm.xlu0 %424, %v417
        %v426 = vpop.permute.xlu0 %425
        %v428 = vld [vmem:[%s10] sm:$0xff]
        %v429 = vld [vmem:[%s10 + $0x8] sm:$0xff]
        %431 = vset.pattern.permute.xlu0 0
        %432 = vperm.xlu0 %431, %v428
        %v433 = vpop.permute.xlu0 %432
        %436 = vset.pattern.permute.xlu0 0
        %437 = vperm.xlu0 %436, %v429
        %v438 = vpop.permute.xlu0 %437
        %v440 = vld [vmem:[%s388] sm:$0xff]
        %v441 = vld [vmem:[%s388 + $0x8] sm:$0xff]
        %v442 = vld [vmem:[%s388 + $0x10] sm:$0xff]
        %v443 = vld [vmem:[%s388 + $0x18] sm:$0xff]
        %v444 = vpack.c.bf16 %v441, %v440
        %v445 = vpack.c.bf16 %v443, %v442
        %v446 = vld [vmem:[%s1] sm:$0xf]
        %v447 = vld [vmem:[%s1 + $0x4] sm:$0xf]
        %v448 = vld [vmem:[%s1 + $0x8] sm:$0xf]
        %v449 = vld [vmem:[%s1 + $0xc] sm:$0xf]
        %v450 = vld [vmem:[%s2] sm:$0x1]
        %v452 = vlaneseq
        %v453 = vshrl.u32 %v452, 7
        %v454 = vsub.s32 0, %v453
        %v455 = vrot.slane %v450, %v454
        %v461 = vunpack.c.l.b16 %v446
        %v462 = vunpack.c.l.b16 %v447
        %v463 = vunpack.c.l.b16 %v448
        %v464 = vunpack.c.l.b16 %v449
        %v465 = vpack.c.b16 %v462, %v461
        %v466 = vpack.c.b16 %v464, %v463
        %vm469 = vcmask 261120
        %v471 = vsel %vm469, %v444, 0
        %v474 = vsel %vm469, %v445, 0
        %476 = vmatprep.subr.bf16.mxu0 0
        %477 = vmatpush1.bf16.msra.mxu0 %v465
        %478 = vmatprep.subr.bf16.mxu0 0
        %479 = vmatpush1.bf16.msra.mxu0 %v466
        %480 = vmatprep.subr.bf16.mxu0 0
        %481 = vmatpush1.bf16.msra.mxu0 0
        %482 = vmatprep.subr.bf16.mxu0 0
        %483 = vmatpush1.bf16.msra.mxu0 0
        %484 = vmatprep.subr.bf16.mxu0 0
        %485 = vmatpush1.bf16.msra.mxu0 0
        %486 = vmatprep.subr.bf16.mxu0 0
        %487 = vmatpush1.bf16.msra.mxu0 0
        %488 = vmatprep.subr.bf16.mxu0 0
        %489 = vmatpush1.bf16.msra.mxu0 0
        %490 = vmatprep.subr.bf16.mxu0 0
        %491 = vmatpush1.bf16.msra.mxu0 0
        %492 = vmatprep.subr.bf16.mxu0 0
        %493 = vmatpush1.bf16.msra.mxu0 0
        %494 = vmatprep.subr.bf16.mxu0 0
        %495 = vmatpush1.bf16.msra.mxu0 0
        %496 = vmatprep.subr.bf16.mxu0 0
        %497 = vmatpush1.bf16.msra.mxu0 0
        %498 = vmatprep.subr.bf16.mxu0 0
        %499 = vmatpush1.bf16.msra.mxu0 0
        %500 = vmatprep.subr.bf16.mxu0 0
        %501 = vmatpush1.bf16.msra.mxu0 0
        %502 = vmatprep.subr.bf16.mxu0 0
        %503 = vmatpush1.bf16.msra.mxu0 0
        %504 = vmatprep.subr.bf16.mxu0 0
        %505 = vmatpush1.bf16.msra.mxu0 0
        %506 = vmatprep.subr.bf16.mxu0 0
        %507 = vmatpush1.bf16.msra.mxu0 0
        %508 = vmatprep.mubr.bf16.mxu0 0
        %509 = vmatmul.mubr.bf16.gmra.mrb[0].mxu0 %v471
        %v510 = vpop.f32.mrb[0].mxu0
        %v511 = vadd.f32 %v455, %v510
        %v512 = vpop.f32.mrb[0].mxu0
        %v513 = vpop.f32.mrb[0].mxu0
        %v514 = vadd.f32 %v455, %v513
        %v515 = vpop.f32.mrb[0].mxu0
        %516 = vmatprep.mubr.bf16.mxu0 0
        %517 = vmatmul.mubr.bf16.gmra.mrb[0].mxu0 %v474
        %v518 = vpop.f32.mrb[0].mxu0
        %v519 = vadd.f32 %v455, %v518
        %v520 = vpop.f32.mrb[0].mxu0
        %v521 = vpop.f32.mrb[0].mxu0
        %v522 = vadd.f32 %v455, %v521
        %v523 = vpop.f32.mrb[0].mxu0
        %524 = vdwg.mxu0
        %v525 = vmul.f32 %v511, 0.5
        %v526 = vmul.f32 %v514, 0.5
        %v527 = vmul.f32 %v519, 0.5
        %v528 = vmul.f32 %v522, 0.5
        %v529 = vmul.f32 %v511, 0.70710677
        %v530 = vmul.f32 %v514, 0.70710677
        %v531 = vmul.f32 %v519, 0.70710677
        %v532 = vmul.f32 %v522, 0.70710677
        %v533 = verf.f32.pop %v529
        %v534 = verf.f32.pop %v530
        %v535 = verf.f32.pop %v531
        %v536 = verf.f32.pop %v532
        %v537 = vadd.f32 %v533, 1.0
        %v538 = vadd.f32 %v534, 1.0
        %v539 = vadd.f32 %v535, 1.0
        %v540 = vadd.f32 %v536, 1.0
        %v541 = vmul.f32 %v525, %v537
        %v542 = vmul.f32 %v526, %v538
        %v543 = vmul.f32 %v527, %v539
        %v544 = vmul.f32 %v528, %v540
        %v545 = vpack.c.bf16 %v542, %v541
        %v546 = vpack.c.bf16 %v544, %v543
        %v547 = vld [vmem:[%s3] sm:$0xf]
        %v548 = vld [vmem:[%s3 + $0x4] sm:$0xf]
        %v549 = vld [vmem:[%s3 + $0x8] sm:$0xf]
        %v550 = vld [vmem:[%s3 + $0xc] sm:$0xf]
        %v551 = vld [vmem:[%s4] sm:$0x1]
        %v553 = vlaneseq
        %v554 = vshrl.u32 %v553, 7
        %v555 = vsub.s32 0, %v554
        %v556 = vrot.slane %v551, %v555
        %v562 = vunpack.c.l.b16 %v547
        %v563 = vunpack.c.l.b16 %v548
        %v564 = vunpack.c.l.b16 %v549
        %v565 = vunpack.c.l.b16 %v550
        %v566 = vpack.c.b16 %v563, %v562
        %v567 = vpack.c.b16 %v565, %v564
        %v571 = vsel %vm469, %v545, 0
        %v574 = vsel %vm469, %v546, 0
        %576 = vmatprep.subr.bf16.mxu0 0
        %577 = vmatpush1.bf16.msra.mxu0 %v566
        %578 = vmatprep.subr.bf16.mxu0 0
        %579 = vmatpush1.bf16.msra.mxu0 %v567
        %580 = vmatprep.subr.bf16.mxu0 0
        %581 = vmatpush1.bf16.msra.mxu0 0
        %582 = vmatprep.subr.bf16.mxu0 0
        %583 = vmatpush1.bf16.msra.mxu0 0
        %584 = vmatprep.subr.bf16.mxu0 0
        %585 = vmatpush1.bf16.msra.mxu0 0
        %586 = vmatprep.subr.bf16.mxu0 0
        %587 = vmatpush1.bf16.msra.mxu0 0
        %588 = vmatprep.subr.bf16.mxu0 0
        %589 = vmatpush1.bf16.msra.mxu0 0
        %590 = vmatprep.subr.bf16.mxu0 0
        %591 = vmatpush1.bf16.msra.mxu0 0
        %592 = vmatprep.subr.bf16.mxu0 0
        %593 = vmatpush1.bf16.msra.mxu0 0
        %594 = vmatprep.subr.bf16.mxu0 0
        %595 = vmatpush1.bf16.msra.mxu0 0
        %596 = vmatprep.subr.bf16.mxu0 0
        %597 = vmatpush1.bf16.msra.mxu0 0
        %598 = vmatprep.subr.bf16.mxu0 0
        %599 = vmatpush1.bf16.msra.mxu0 0
        %600 = vmatprep.subr.bf16.mxu0 0
        %601 = vmatpush1.bf16.msra.mxu0 0
        %602 = vmatprep.subr.bf16.mxu0 0
        %603 = vmatpush1.bf16.msra.mxu0 0
        %604 = vmatprep.subr.bf16.mxu0 0
        %605 = vmatpush1.bf16.msra.mxu0 0
        %606 = vmatprep.subr.bf16.mxu0 0
        %607 = vmatpush1.bf16.msra.mxu0 0
        %608 = vmatprep.mubr.bf16.mxu0 0
        %609 = vmatmul.mubr.bf16.gmra.mrb[0].mxu0 %v571
        %v610 = vpop.f32.mrb[0].mxu0
        %v611 = vadd.f32 %v556, %v610
        %v612 = vpop.f32.mrb[0].mxu0
        %v613 = vpop.f32.mrb[0].mxu0
        %v614 = vadd.f32 %v556, %v613
        %v615 = vpop.f32.mrb[0].mxu0
        %616 = vmatprep.mubr.bf16.mxu0 0
        %617 = vmatmul.mubr.bf16.gmra.mrb[0].mxu0 %v574
        %v618 = vpop.f32.mrb[0].mxu0
        %v619 = vadd.f32 %v556, %v618
        %v620 = vpop.f32.mrb[0].mxu0
        %v621 = vpop.f32.mrb[0].mxu0
        %v622 = vadd.f32 %v556, %v621
        %v623 = vpop.f32.mrb[0].mxu0
        %624 = vdwg.mxu0
        %v625 = vadd.f32 %v440, %v611
        %v626 = vadd.f32 %v441, %v614
        %v627 = vadd.f32 %v442, %v619
        %v628 = vadd.f32 %v443, %v622
        %v629 = vpack.c.bf16 %v626, %v625
        %v630 = vpack.c.bf16 %v628, %v627
        %v631 = vld [vmem:[%s5] sm:$0xf]
        %v632 = vld [vmem:[%s5 + $0x4] sm:$0xf]
        %v635 = vunpack.c.l.b16 %v631
        %v636 = vunpack.c.l.b16 %v632
        %v637 = vpack.c.b16 %v636, %v635
        %vm638 = vcmask 130048
        %v640 = vsel %vm638, %v637, 0
        %642 = vmatprep.subr.bf16.mxu0 0
        %643 = vmatpush1.bf16.msra.mxu0 %v629
        %644 = vmatprep.subr.bf16.mxu0 0
        %645 = vmatpush1.bf16.msra.mxu0 0
        %646 = vmatprep.subr.bf16.mxu0 0
        %647 = vmatpush1.bf16.msra.mxu0 0
        %648 = vmatprep.subr.bf16.mxu0 0
        %649 = vmatpush1.bf16.msra.mxu0 0
        %650 = vmatprep.subr.bf16.mxu0 0
        %651 = vmatpush1.bf16.msra.mxu0 0
        %652 = vmatprep.subr.bf16.mxu0 0
        %653 = vmatpush1.bf16.msra.mxu0 0
        %654 = vmatprep.subr.bf16.mxu0 0
        %655 = vmatpush1.bf16.msra.mxu0 0
        %656 = vmatprep.subr.bf16.mxu0 0
        %657 = vmatpush1.bf16.msra.mxu0 0
        %658 = vmatprep.subr.bf16.mxu0 0
        %659 = vmatpush1.bf16.msra.mxu0 0
        %660 = vmatprep.subr.bf16.mxu0 0
        %661 = vmatpush1.bf16.msra.mxu0 0
        %662 = vmatprep.subr.bf16.mxu0 0
        %663 = vmatpush1.bf16.msra.mxu0 0
        %664 = vmatprep.subr.bf16.mxu0 0
        %665 = vmatpush1.bf16.msra.mxu0 0
        %666 = vmatprep.subr.bf16.mxu0 0
        %667 = vmatpush1.bf16.msra.mxu0 0
        %668 = vmatprep.subr.bf16.mxu0 0
        %669 = vmatpush1.bf16.msra.mxu0 0
        %670 = vmatprep.subr.bf16.mxu0 0
        %671 = vmatpush1.bf16.msra.mxu0 0
        %672 = vmatprep.subr.bf16.mxu0 0
        %673 = vmatpush1.bf16.msra.mxu0 0
        %674 = vmatprep.mubr.bf16.mxu0 0
        %675 = vmatmul.mubr.bf16.gmra.mrb[0].mxu0 %v640
        %v676 = vpop.f32.mrb[0].mxu0
        %v677 = vadd.f32 %v397, %v676
        %v678 = vpop.f32.mrb[0].mxu0
        %v679 = vpop.f32.mrb[0].mxu0
        %v680 = vadd.f32 %v402, %v679
        %v681 = vpop.f32.mrb[0].mxu0
        %682 = vdwg.mxu0
        %v683 = vsel %vm469, %v677, 0.0
        %v684 = vsel %vm469, %v680, 0.0
        %v685 = vadd.f32 %v683, %v684
        %v686 = vrot.slane %v685, 4
        %v687 = vadd.f32 %v685, %v686
        %v688 = vrot.slane %v687, 2
        %v689 = vadd.f32 %v687, %v688
        %v690 = vrot.slane %v689, 1
        %v691 = vadd.f32 %v689, %v690
        %v692 = vrcp.pop 16.0
        %v693 = vmul.f32 %v691, %v692
        %v694 = vsub.f32 %v677, %v693
        %v695 = vsub.f32 %v680, %v693
        %v696 = vmul.f32 %v694, %v694
        %v697 = vmul.f32 %v695, %v695
        %v698 = vsel %vm469, %v696, 0.0
        %v699 = vsel %vm469, %v697, 0.0
        %v700 = vadd.f32 %v698, %v699
        %v701 = vrot.slane %v700, 4
        %v702 = vadd.f32 %v700, %v701
        %v703 = vrot.slane %v702, 2
        %v704 = vadd.f32 %v702, %v703
        %v705 = vrot.slane %v704, 1
        %v706 = vadd.f32 %v704, %v705
        %v707 = vmul.f32 %v706, %v692
        %v708 = vadd.f32 %v707, 1e-05
        %v709 = vrsqrt.pop %v708
        %v710 = vmul.f32 %v694, %v709
        %v711 = vmul.f32 %v695, %v709
        %v712 = vmul.f32 %v710, %v409
        %v713 = vmul.f32 %v711, %v414
        %v714 = vadd.f32 %v712, %v421
        %v715 = vadd.f32 %v713, %v426
        %v716 = vmul.f32 %v714, 0.5
        %v717 = vmul.f32 %v715, 0.5
        %v718 = vmul.f32 %v714, 0.70710677
        %v719 = vmul.f32 %v715, 0.70710677
        %v720 = verf.f32.pop %v718
        %v721 = verf.f32.pop %v719
        %v722 = vadd.f32 %v720, 1.0
        %v723 = vadd.f32 %v721, 1.0
        %v724 = vmul.f32 %v716, %v722
        %v725 = vmul.f32 %v717, %v723
        %v726 = vld [vmem:[%s9] sm:$0xf]
        %v727 = vld [vmem:[%s9 + $0x4] sm:$0xf]
        %v728 = vpack.c.bf16 %v725, %v724
        %v731 = vunpack.c.l.b16 %v726
        %v732 = vunpack.c.l.b16 %v727
        %v733 = vpack.c.b16 %v732, %v731
        %v735 = vsel %vm638, %v733, 0
        %737 = vmatprep.subr.bf16.mxu0 0
        %738 = vmatpush1.bf16.msra.mxu0 %v728
        %739 = vmatprep.subr.bf16.mxu0 0
        %740 = vmatpush1.bf16.msra.mxu0 0
        %741 = vmatprep.subr.bf16.mxu0 0
        %742 = vmatpush1.bf16.msra.mxu0 0
        %743 = vmatprep.subr.bf16.mxu0 0
        %744 = vmatpush1.bf16.msra.mxu0 0
        %745 = vmatprep.subr.bf16.mxu0 0
        %746 = vmatpush1.bf16.msra.mxu0 0
        %747 = vmatprep.subr.bf16.mxu0 0
        %748 = vmatpush1.bf16.msra.mxu0 0
        %749 = vmatprep.subr.bf16.mxu0 0
        %750 = vmatpush1.bf16.msra.mxu0 0
        %751 = vmatprep.subr.bf16.mxu0 0
        %752 = vmatpush1.bf16.msra.mxu0 0
        %753 = vmatprep.subr.bf16.mxu0 0
        %754 = vmatpush1.bf16.msra.mxu0 0
        %755 = vmatprep.subr.bf16.mxu0 0
        %756 = vmatpush1.bf16.msra.mxu0 0
        %757 = vmatprep.subr.bf16.mxu0 0
        %758 = vmatpush1.bf16.msra.mxu0 0
        %759 = vmatprep.subr.bf16.mxu0 0
        %760 = vmatpush1.bf16.msra.mxu0 0
        %761 = vmatprep.subr.bf16.mxu0 0
        %762 = vmatpush1.bf16.msra.mxu0 0
        %763 = vmatprep.subr.bf16.mxu0 0
        %764 = vmatpush1.bf16.msra.mxu0 0
        %765 = vmatprep.subr.bf16.mxu0 0
        %766 = vmatpush1.bf16.msra.mxu0 0
        %767 = vmatprep.subr.bf16.mxu0 0
        %768 = vmatpush1.bf16.msra.mxu0 0
        %769 = vmatprep.mubr.bf16.mxu0 0
        %770 = vmatmul.mubr.bf16.gmra.mrb[0].mxu0 %v735
        %v771 = vpop.f32.mrb[0].mxu0
        %v772 = vadd.f32 %v433, %v771
        %v773 = vpop.f32.mrb[0].mxu0
        %v774 = vpop.f32.mrb[0].mxu0
        %v775 = vadd.f32 %v438, %v774
        %v776 = vpop.f32.mrb[0].mxu0
        %777 = vdwg.mxu0
        %v778 = vadd.f32 %v625, %v772
        %v779 = vadd.f32 %v626, %v775
        %780 = vst.msk [vmem:[%s382] sm:$0xff] %vm469, %v778
        %781 = vst.msk [vmem:[%s382 + $0x8] sm:$0xff] %vm469, %v779
        %v782 = vld [vmem:[%s5] sm:$0xf]
        %v783 = vld [vmem:[%s5 + $0x4] sm:$0xf]
        %v786 = vunpack.c.l.b16 %v782
        %v787 = vunpack.c.l.b16 %v783
        %v788 = vpack.c.b16 %v787, %v786
        %v790 = vsel %vm638, %v788, 0
        %792 = vmatprep.subr.bf16.mxu0 0
        %793 = vmatpush1.bf16.msra.mxu0 %v630
        %794 = vmatprep.subr.bf16.mxu0 0
        %795 = vmatpush1.bf16.msra.mxu0 0
        %796 = vmatprep.subr.bf16.mxu0 0
        %797 = vmatpush1.bf16.msra.mxu0 0
        %798 = vmatprep.subr.bf16.mxu0 0
        %799 = vmatpush1.bf16.msra.mxu0 0
        %800 = vmatprep.subr.bf16.mxu0 0
        %801 = vmatpush1.bf16.msra.mxu0 0
        %802 = vmatprep.subr.bf16.mxu0 0
        %803 = vmatpush1.bf16.msra.mxu0 0
        %804 = vmatprep.subr.bf16.mxu0 0
        %805 = vmatpush1.bf16.msra.mxu0 0
        %806 = vmatprep.subr.bf16.mxu0 0
        %807 = vmatpush1.bf16.msra.mxu0 0
        %808 = vmatprep.subr.bf16.mxu0 0
        %809 = vmatpush1.bf16.msra.mxu0 0
        %810 = vmatprep.subr.bf16.mxu0 0
        %811 = vmatpush1.bf16.msra.mxu0 0
        %812 = vmatprep.subr.bf16.mxu0 0
        %813 = vmatpush1.bf16.msra.mxu0 0
        %814 = vmatprep.subr.bf16.mxu0 0
        %815 = vmatpush1.bf16.msra.mxu0 0
        %816 = vmatprep.subr.bf16.mxu0 0
        %817 = vmatpush1.bf16.msra.mxu0 0
        %818 = vmatprep.subr.bf16.mxu0 0
        %819 = vmatpush1.bf16.msra.mxu0 0
        %820 = vmatprep.subr.bf16.mxu0 0
        %821 = vmatpush1.bf16.msra.mxu0 0
        %822 = vmatprep.subr.bf16.mxu0 0
        %823 = vmatpush1.bf16.msra.mxu0 0
        %824 = vmatprep.mubr.bf16.mxu0 0
        %825 = vmatmul.mubr.bf16.gmra.mrb[0].mxu0 %v790
        %v826 = vpop.f32.mrb[0].mxu0
        %v827 = vadd.f32 %v397, %v826
        %v828 = vpop.f32.mrb[0].mxu0
        %v829 = vpop.f32.mrb[0].mxu0
        %v830 = vadd.f32 %v402, %v829
        %v831 = vpop.f32.mrb[0].mxu0
        %832 = vdwg.mxu0
        %v833 = vsel %vm469, %v827, 0.0
        %v834 = vsel %vm469, %v830, 0.0
        %v835 = vadd.f32 %v833, %v834
        %v836 = vrot.slane %v835, 4
        %v837 = vadd.f32 %v835, %v836
        %v838 = vrot.slane %v837, 2
        %v839 = vadd.f32 %v837, %v838
        %v840 = vrot.slane %v839, 1
        %v841 = vadd.f32 %v839, %v840
        %v842 = vmul.f32 %v841, %v692
        %v843 = vsub.f32 %v827, %v842
        %v844 = vsub.f32 %v830, %v842
        %v845 = vmul.f32 %v843, %v843
        %v846 = vmul.f32 %v844, %v844
        %v847 = vsel %vm469, %v845, 0.0
        %v848 = vsel %vm469, %v846, 0.0
        %v849 = vadd.f32 %v847, %v848
        %v850 = vrot.slane %v849, 4
        %v851 = vadd.f32 %v849, %v850
        %v852 = vrot.slane %v851, 2
        %v853 = vadd.f32 %v851, %v852
        %v854 = vrot.slane %v853, 1
        %v855 = vadd.f32 %v853, %v854
        %v856 = vmul.f32 %v855, %v692
        %v857 = vadd.f32 %v856, 1e-05
        %v858 = vrsqrt.pop %v857
        %v859 = vmul.f32 %v843, %v858
        %v860 = vmul.f32 %v844, %v858
        %v861 = vmul.f32 %v859, %v409
        %v862 = vmul.f32 %v860, %v414
        %v863 = vadd.f32 %v861, %v421
        %v864 = vadd.f32 %v862, %v426
        %v865 = vmul.f32 %v863, 0.5
        %v866 = vmul.f32 %v864, 0.5
        %v867 = vmul.f32 %v863, 0.70710677
        %v868 = vmul.f32 %v864, 0.70710677
        %v869 = verf.f32.pop %v867
        %v870 = verf.f32.pop %v868
        %v871 = vadd.f32 %v869, 1.0
        %v872 = vadd.f32 %v870, 1.0
        %v873 = vmul.f32 %v865, %v871
        %v874 = vmul.f32 %v866, %v872
        %v875 = vld [vmem:[%s9] sm:$0xf]
        %v876 = vld [vmem:[%s9 + $0x4] sm:$0xf]
        %v877 = vpack.c.bf16 %v874, %v873
        %v880 = vunpack.c.l.b16 %v875
        %v881 = vunpack.c.l.b16 %v876
        %v882 = vpack.c.b16 %v881, %v880
        %v884 = vsel %vm638, %v882, 0
        %886 = vmatprep.subr.bf16.mxu0 0
        %887 = vmatpush1.bf16.msra.mxu0 %v877
        %888 = vmatprep.subr.bf16.mxu0 0
        %889 = vmatpush1.bf16.msra.mxu0 0
        %890 = vmatprep.subr.bf16.mxu0 0
        %891 = vmatpush1.bf16.msra.mxu0 0
        %892 = vmatprep.subr.bf16.mxu0 0
        %893 = vmatpush1.bf16.msra.mxu0 0
        %894 = vmatprep.subr.bf16.mxu0 0
        %895 = vmatpush1.bf16.msra.mxu0 0
        %896 = vmatprep.subr.bf16.mxu0 0
        %897 = vmatpush1.bf16.msra.mxu0 0
        %898 = vmatprep.subr.bf16.mxu0 0
        %899 = vmatpush1.bf16.msra.mxu0 0
        %900 = vmatprep.subr.bf16.mxu0 0
        %901 = vmatpush1.bf16.msra.mxu0 0
        %902 = vmatprep.subr.bf16.mxu0 0
        %903 = vmatpush1.bf16.msra.mxu0 0
        %904 = vmatprep.subr.bf16.mxu0 0
        %905 = vmatpush1.bf16.msra.mxu0 0
        %906 = vmatprep.subr.bf16.mxu0 0
        %907 = vmatpush1.bf16.msra.mxu0 0
        %908 = vmatprep.subr.bf16.mxu0 0
        %909 = vmatpush1.bf16.msra.mxu0 0
        %910 = vmatprep.subr.bf16.mxu0 0
        %911 = vmatpush1.bf16.msra.mxu0 0
        %912 = vmatprep.subr.bf16.mxu0 0
        %913 = vmatpush1.bf16.msra.mxu0 0
        %914 = vmatprep.subr.bf16.mxu0 0
        %915 = vmatpush1.bf16.msra.mxu0 0
        %916 = vmatprep.subr.bf16.mxu0 0
        %917 = vmatpush1.bf16.msra.mxu0 0
        %918 = vmatprep.mubr.bf16.mxu0 0
        %919 = vmatmul.mubr.bf16.gmra.mrb[0].mxu0 %v884
        %v920 = vpop.f32.mrb[0].mxu0
        %v921 = vadd.f32 %v433, %v920
        %v922 = vpop.f32.mrb[0].mxu0
        %v923 = vpop.f32.mrb[0].mxu0
        %v924 = vadd.f32 %v438, %v923
        %v925 = vpop.f32.mrb[0].mxu0
        %926 = vdwg.mxu0
        %v927 = vadd.f32 %v627, %v921
        %v928 = vadd.f32 %v628, %v924
        %s929 = scalar_lea.vmem %s382, 16 [#allocation2]
        %930 = vst.msk [vmem:[%s929] sm:$0xff] %vm469, %v927
        %931 = vst.msk [vmem:[%s929 + $0x8] sm:$0xff] %vm469, %v928
        %s932 = sand.u32 %s269, 1
        %s933 = scalar_lea.sflag [#allocation3], %s932
        %s934 = sand.u32 %s269, 1
        %s935 = smul.addr %s934, 32
        %s936 = scalar_lea.vmem [#allocation2], %s935
        // Predicated region
        $region65: #{mlp_mixer_encoder_layer.1} parent=63 // pred_check
          %p937 = pneg %p279
        $region66: #{mlp_mixer_encoder_layer.1} parent=63 // pred_check_branch
          %939 = sbr.rel (%p937) target = $region68
        $region67: #{mlp_mixer_encoder_layer.1} parent=63 // pred_region
          %s940 = smul.u32 2, %s25
          %s942 = ssub.s32 512, 512
          %943 = vsyncadd %s933, %s942
          %s944 = smul.addr %s940, 2
          %s945 = smul.addr %s944, 128
          %s946 = scalar_lea.hbm %s11, %s945
          %s947 = sshll.u32 %s936, 4
          %s948 = int_to_ptr.vmem [resolvable:$true] %s947
          %953 = dma.vmem_to_hbm [thread:$0]  %s948, 512, %s946, %s933, 128, 128, 8
        $region68: #{mlp_mixer_encoder_layer.1} parent=63 // pred_fallthru
          _
      $region64: #{mlp_mixer_encoder_layer.1} parent=5 // pred_fallthru
        _
      %p954 = scmp.le.s32.totalorder 2, %s20
      // Predicated region
      $region69: #{mlp_mixer_encoder_layer.1} parent=5 // pred_check
        %p955 = pneg %p954
      $region70: #{mlp_mixer_encoder_layer.1} parent=5 // pred_check_branch
        %957 = sbr.rel (%p955) target = $region72
      $region71: #{mlp_mixer_encoder_layer.1} parent=5 // pred_region
        %s958 = ssub.s32 %s20, 2
        // Predicated region
        $region73: #{mlp_mixer_encoder_layer.1} parent=71 // pred_check
          %p959 = pneg %p285
        $region74: #{mlp_mixer_encoder_layer.1} parent=71 // pred_check_branch
          %961 = sbr.rel (%p959) target = $region76
        $region75: #{mlp_mixer_encoder_layer.1} parent=71 // pred_region
          %s962 = sand.u32 %s270, 1
          %s963 = scalar_lea.sflag [#allocation3], %s962
          %s964 = sand.u32 %s270, 1
          %s965 = smul.addr %s964, 32
          %s966 = scalar_lea.vmem [#allocation2], %s965
          %967 = dma.done %s963, 512
        $region76: #{mlp_mixer_encoder_layer.1} parent=71 // pred_fallthru
          _
      $region72: #{mlp_mixer_encoder_layer.1} parent=5 // pred_fallthru
        _
    $region6: #{mlp_mixer_encoder_layer.1} parent=1 // loop_footer
      %s24 = sadd.s32 1, %s20
    $region7: #{mlp_mixer_encoder_layer.1} parent=1 // loop_footer_branch
      %19 = sbr.rel target = $region3
    $region8: #{mlp_mixer_encoder_layer.1} parent=1 // loop_exit
      _
    %968 = vsyncpa [#allocation3], 1
    %s969 = scalar_lea.sflag [#allocation3], 1
    %970 = vsyncpa %s969, 1

// kernel: mlp_mixer_encoder_layer.1
$region0: #{mlp_mixer_encoder_layer.1}
  #allocation0 [shape = 'u32[]', space=smem, size = 0x4, offset = 0x4, fixed_abs, tag = 'smem constant byte address 0x4 - core index']
  #allocation1 [shape = 'u32[144,128]{1,0:T(1,128)}', space=vmem, size = 0x12000, scoped, tag = 'internal scratch']
  %s0 = inlined_call_operand.vmem [shape: f32[4,16,32], index: 0, kind: input, shape index: {}]
  %s1 = inlined_call_operand.vmem [shape: bf16[32,32], index: 1, kind: input, shape index: {}]
  %s2 = inlined_call_operand.vmem [shape: f32[1,32], index: 2, kind: input, shape index: {}]
  %s3 = inlined_call_operand.vmem [shape: bf16[32,32], index: 3, kind: input, shape index: {}]
  %s4 = inlined_call_operand.vmem [shape: f32[1,32], index: 4, kind: input, shape index: {}]
  %s5 = inlined_call_operand.vmem [shape: bf16[16,16], index: 5, kind: input, shape index: {}]
  %s6 = inlined_call_operand.vmem [shape: f32[16,1], index: 6, kind: input, shape index: {}]
  %s7 = inlined_call_operand.vmem [shape: f32[16,1], index: 7, kind: input, shape index: {}]
  %s8 = inlined_call_operand.vmem [shape: f32[16,1], index: 8, kind: input, shape index: {}]
  %s9 = inlined_call_operand.vmem [shape: bf16[16,16], index: 9, kind: input, shape index: {}]
  %s10 = inlined_call_operand.vmem [shape: f32[16,1], index: 10, kind: input, shape index: {}]
  %s11 = inlined_call_operand.hbm [shape: f32[4,16,32], index: 11, kind: output, shape index: {}]
  %s12 = sld [smem:[#allocation0]]
  $region77: #{mlp_mixer_encoder_layer.1} parent=0
    _
  %s14 = ssub.s32 1, %s12
  %s15 = scalar_select 0, %s14, %s12
  $region1: #{mlp_mixer_encoder_layer.1} parent=0
    #allocation2 [shape = 'u8[32768]{0}', space=vmem, size = 0x8000, scoped, tag = 'output window, operand 0']
    #allocation3 [shape = 's32[2]{0}', space=sflag, size = 0x8, scoped, tag = 'scoped memory for mlp_mixer_encoder_layer.1']
    %16 = vsyncpa [#allocation3], 0
    %s17 = scalar_lea.sflag [#allocation3], 1
    %18 = vsyncpa %s17, 0
    loop: start=0, step=1, limit=4
    $region2: #{mlp_mixer_encoder_layer.1} parent=1 // loop_pre_header
      _
    $region3: #{mlp_mixer_encoder_layer.1} parent=1 // loop_header
      %s20 = sphi 0, %s24
      %p21 = scmp.ge.s32.totalorder %s20, 4
      %s30 = sphi 0, %s32
      %s33 = sphi 0, %s30
      %s34 = sphi 0, %s33
      %s50 = sphi 0, %s34
      %s54 = sphi 0, %s54
      %s56 = sphi 0, %s54
      %s57 = sphi 0, %s56
      %s71 = sphi 0, %s57
      %s75 = sphi 0, %s75
      %s77 = sphi 0, %s75
      %s78 = sphi 0, %s77
      %s92 = sphi 0, %s78
      %s96 = sphi 0, %s96
      %s98 = sphi 0, %s96
      %s99 = sphi 0, %s98
      %s113 = sphi 0, %s99
      %s117 = sphi 0, %s117
      %s119 = sphi 0, %s117
      %s120 = sphi 0, %s119
      %s134 = sphi 0, %s120
      %s138 = sphi 0, %s138
      %s140 = sphi 0, %s138
      %s141 = sphi 0, %s140
      %s155 = sphi 0, %s141
      %s159 = sphi 0, %s159
      %s161 = sphi 0, %s159
      %s162 = sphi 0, %s161
      %s176 = sphi 0, %s162
      %s180 = sphi 0, %s180
      %s182 = sphi 0, %s180
      %s183 = sphi 0, %s182
      %s197 = sphi 0, %s183
      %s201 = sphi 0, %s201
      %s203 = sphi 0, %s201
      %s204 = sphi 0, %s203
      %s218 = sphi 0, %s204
      %s222 = sphi 0, %s222
      %s224 = sphi 0, %s222
      %s225 = sphi 0, %s224
      %s239 = sphi 0, %s225
      %s243 = sphi 0, %s243
      %s245 = sphi 0, %s243
      %s246 = sphi 0, %s245
      %s260 = sphi 0, %s246
      %s266 = sphi 0, %s268
      %s269 = sphi 0, %s266
      %s270 = sphi 0, %s269
      %s286 = sphi 0, %s270
    $region4: #{mlp_mixer_encoder_layer.1} parent=1 // loop_header_branch
      %23 = sbr.rel (%p21) target = $region8
    $region5: #{mlp_mixer_encoder_layer.1} parent=1 // loop_body
      %s25 = ssub.s32 %s20, 1
      %s26 = ssub.s32 %s20, 2
      %s27 = sadd.s32 %s20, 1
      %s28 = ssub.s32 %s20, %s27
      %p29 = scmp.eq.s32.totalorder %s28, 0
      %s31 = sadd.s32 %s30, 1
      %s32 = scalar_select %p29, %s30, %s31
      %p35 = pneg %p29
      %p36 = scmp.eq.s32.totalorder %s20, 1
      %p37 = por %p35, %p36
      %p38 = scmp.ne.s32.totalorder %s30, %s33
      %p39 = scmp.eq.s32.totalorder %s20, 0
      %p40 = por %p38, %p39
      %p41 = scmp.ne.s32.totalorder %s30, %s33
      %p42 = scmp.eq.s32.totalorder %s25, 1
      %p43 = por %p41, %p42
      %p44 = scmp.ne.s32.totalorder %s33, %s34
      %p45 = scmp.eq.s32.totalorder %s25, 0
      %p46 = por %p44, %p45
      %p47 = scmp.ne.s32.totalorder %s33, %s34
      %p48 = scmp.eq.s32.totalorder %s26, 1
      %p49 = por %p47, %p48
      %p51 = scmp.ne.s32.totalorder %s34, %s50
      %p52 = scmp.eq.s32.totalorder %s26, 0
      %p53 = por %p51, %p52
      %s55 = sadd.s32 %s54, 1
      %p58 = scmp.eq.s32.totalorder %s20, 1
      %p59 = scmp.ne.s32.totalorder %s54, %s56
      %p60 = scmp.eq.s32.totalorder %s20, 0
      %p61 = por %p59, %p60
      %p62 = scmp.ne.s32.totalorder %s54, %s56
      %p63 = scmp.eq.s32.totalorder %s25, 1
      %p64 = por %p62, %p63
      %p65 = scmp.ne.s32.totalorder %s56, %s57
      %p66 = scmp.eq.s32.totalorder %s25, 0
      %p67 = por %p65, %p66
      %p68 = scmp.ne.s32.totalorder %s56, %s57
      %p69 = scmp.eq.s32.totalorder %s26, 1
      %p70 = por %p68, %p69
      %p72 = scmp.ne.s32.totalorder %s57, %s71
      %p73 = scmp.eq.s32.totalorder %s26, 0
      %p74 = por %p72, %p73
      %s76 = sadd.s32 %s75, 1
      %p79 = scmp.eq.s32.totalorder %s20, 1
      %p80 = scmp.ne.s32.totalorder %s75, %s77
      %p81 = scmp.eq.s32.totalorder %s20, 0
      %p82 = por %p80, %p81
      %p83 = scmp.ne.s32.totalorder %s75, %s77
      %p84 = scmp.eq.s32.totalorder %s25, 1
      %p85 = por %p83, %p84
      %p86 = scmp.ne.s32.totalorder %s77, %s78
      %p87 = scmp.eq.s32.totalorder %s25, 0
      %p88 = por %p86, %p87
      %p89 = scmp.ne.s32.totalorder %s77, %s78
      %p90 = scmp.eq.s32.totalorder %s26, 1
      %p91 = por %p89, %p90
      %p93 = scmp.ne.s32.totalorder %s78, %s92
      %p94 = scmp.eq.s32.totalorder %s26, 0
      %p95 = por %p93, %p94
      %s97 = sadd.s32 %s96, 1
      %p100 = scmp.eq.s32.totalorder %s20, 1
      %p101 = scmp.ne.s32.totalorder %s96, %s98
      %p102 = scmp.eq.s32.totalorder %s20, 0
      %p103 = por %p101, %p102
      %p104 = scmp.ne.s32.totalorder %s96, %s98
      %p105 = scmp.eq.s32.totalorder %s25, 1
      %p106 = por %p104, %p105
      %p107 = scmp.ne.s32.totalorder %s98, %s99
      %p108 = scmp.eq.s32.totalorder %s25, 0
      %p109 = por %p107, %p108
      %p110 = scmp.ne.s32.totalorder %s98, %s99
      %p111 = scmp.eq.s32.totalorder %s26, 1
      %p112 = por %p110, %p111
      %p114 = scmp.ne.s32.totalorder %s99, %s113
      %p115 = scmp.eq.s32.totalorder %s26, 0
      %p116 = por %p114, %p115
      %s118 = sadd.s32 %s117, 1
      %p121 = scmp.eq.s32.totalorder %s20, 1
      %p122 = scmp.ne.s32.totalorder %s117, %s119
      %p123 = scmp.eq.s32.totalorder %s20, 0
      %p124 = por %p122, %p123
      %p125 = scmp.ne.s32.totalorder %s117, %s119
      %p126 = scmp.eq.s32.totalorder %s25, 1
      %p127 = por %p125, %p126
      %p128 = scmp.ne.s32.totalorder %s119, %s120
      %p129 = scmp.eq.s32.totalorder %s25, 0
      %p130 = por %p128, %p129
      %p131 = scmp.ne.s32.totalorder %s119, %s120
      %p132 = scmp.eq.s32.totalorder %s26, 1
      %p133 = por %p131, %p132
      %p135 = scmp.ne.s32.totalorder %s120, %s134
      %p136 = scmp.eq.s32.totalorder %s26, 0
      %p137 = por %p135, %p136
      %s139 = sadd.s32 %s138, 1
      %p142 = scmp.eq.s32.totalorder %s20, 1
      %p143 = scmp.ne.s32.totalorder %s138, %s140
      %p144 = scmp.eq.s32.totalorder %s20, 0
      %p145 = por %p143, %p144
      %p146 = scmp.ne.s32.totalorder %s138, %s140
      %p147 = scmp.eq.s32.totalorder %s25, 1
      %p148 = por %p146, %p147
      %p149 = scmp.ne.s32.totalorder %s140, %s141
      %p150 = scmp.eq.s32.totalorder %s25, 0
      %p151 = por %p149, %p150
      %p152 = scmp.ne.s32.totalorder %s140, %s141
      %p153 = scmp.eq.s32.totalorder %s26, 1
      %p154 = por %p152, %p153
      %p156 = scmp.ne.s32.totalorder %s141, %s155
      %p157 = scmp.eq.s32.totalorder %s26, 0
      %p158 = por %p156, %p157
      %s160 = sadd.s32 %s159, 1
      %p163 = scmp.eq.s32.totalorder %s20, 1
      %p164 = scmp.ne.s32.totalorder %s159, %s161
      %p165 = scmp.eq.s32.totalorder %s20, 0
      %p166 = por %p164, %p165
      %p167 = scmp.ne.s32.totalorder %s159, %s161
      %p168 = scmp.eq.s32.totalorder %s25, 1
      %p169 = por %p167, %p168
      %p170 = scmp.ne.s32.totalorder %s161, %s162
      %p171 = scmp.eq.s32.totalorder %s25, 0
      %p172 = por %p170, %p171
      %p173 = scmp.ne.s32.totalorder %s161, %s162
      %p174 = scmp.eq.s32.totalorder %s26, 1
      %p175 = por %p173, %p174
      %p177 = scmp.ne.s32.totalorder %s162, %s176
      %p178 = scmp.eq.s32.totalorder %s26, 0
      %p179 = por %p177, %p178
      %s181 = sadd.s32 %s180, 1
      %p184 = scmp.eq.s32.totalorder %s20, 1
      %p185 = scmp.ne.s32.totalorder %s180, %s182
      %p186 = scmp.eq.s32.totalorder %s20, 0
      %p187 = por %p185, %p186
      %p188 = scmp.ne.s32.totalorder %s180, %s182
      %p189 = scmp.eq.s32.totalorder %s25, 1
      %p190 = por %p188, %p189
      %p191 = scmp.ne.s32.totalorder %s182, %s183
      %p192 = scmp.eq.s32.totalorder %s25, 0
      %p193 = por %p191, %p192
      %p194 = scmp.ne.s32.totalorder %s182, %s183
      %p195 = scmp.eq.s32.totalorder %s26, 1
      %p196 = por %p194, %p195
      %p198 = scmp.ne.s32.totalorder %s183, %s197
      %p199 = scmp.eq.s32.totalorder %s26, 0
      %p200 = por %p198, %p199
      %s202 = sadd.s32 %s201, 1
      %p205 = scmp.eq.s32.totalorder %s20, 1
      %p206 = scmp.ne.s32.totalorder %s201, %s203
      %p207 = scmp.eq.s32.totalorder %s20, 0
      %p208 = por %p206, %p207
      %p209 = scmp.ne.s32.totalorder %s201, %s203
      %p210 = scmp.eq.s32.totalorder %s25, 1
      %p211 = por %p209, %p210
      %p212 = scmp.ne.s32.totalorder %s203, %s204
      %p213 = scmp.eq.s32.totalorder %s25, 0
      %p214 = por %p212, %p213
      %p215 = scmp.ne.s32.totalorder %s203, %s204
      %p216 = scmp.eq.s32.totalorder %s26, 1
      %p217 = por %p215, %p216
      %p219 = scmp.ne.s32.totalorder %s204, %s218
      %p220 = scmp.eq.s32.totalorder %s26, 0
      %p221 = por %p219, %p220
      %s223 = sadd.s32 %s222, 1
      %p226 = scmp.eq.s32.totalorder %s20, 1
      %p227 = scmp.ne.s32.totalorder %s222, %s224
      %p228 = scmp.eq.s32.totalorder %s20, 0
      %p229 = por %p227, %p228
      %p230 = scmp.ne.s32.totalorder %s222, %s224
      %p231 = scmp.eq.s32.totalorder %s25, 1
      %p232 = por %p230, %p231
      %p233 = scmp.ne.s32.totalorder %s224, %s225
      %p234 = scmp.eq.s32.totalorder %s25, 0
      %p235 = por %p233, %p234
      %p236 = scmp.ne.s32.totalorder %s224, %s225
      %p237 = scmp.eq.s32.totalorder %s26, 1
      %p238 = por %p236, %p237
      %p240 = scmp.ne.s32.totalorder %s225, %s239
      %p241 = scmp.eq.s32.totalorder %s26, 0
      %p242 = por %p240, %p241
      %s244 = sadd.s32 %s243, 1
      %p247 = scmp.eq.s32.totalorder %s20, 1
      %p248 = scmp.ne.s32.totalorder %s243, %s245
      %p249 = scmp.eq.s32.totalorder %s20, 0
      %p250 = por %p248, %p249
      %p251 = scmp.ne.s32.totalorder %s243, %s245
      %p252 = scmp.eq.s32.totalorder %s25, 1
      %p253 = por %p251, %p252
      %p254 = scmp.ne.s32.totalorder %s245, %s246
      %p255 = scmp.eq.s32.totalorder %s25, 0
      %p256 = por %p254, %p255
      %p257 = scmp.ne.s32.totalorder %s245, %s246
      %p258 = scmp.eq.s32.totalorder %s26, 1
      %p259 = por %p257, %p258
      %p261 = scmp.ne.s32.totalorder %s246, %s260
      %p262 = scmp.eq.s32.totalorder %s26, 0
      %p263 = por %p261, %p262
      %s264 = ssub.s32 %s20, %s27
      %p265 = scmp.eq.s32.totalorder %s264, 0
      %s267 = sadd.s32 %s266, 1
      %s268 = scalar_select %p265, %s266, %s267
      %p271 = pneg %p265
      %p272 = scmp.eq.s32.totalorder %s20, 1
      %p273 = por %p271, %p272
      %p274 = scmp.ne.s32.totalorder %s266, %s269
      %p275 = scmp.eq.s32.totalorder %s20, 0
      %p276 = por %p274, %p275
      %p277 = scmp.ne.s32.totalorder %s266, %s269
      %p278 = scmp.eq.s32.totalorder %s25, 1
      %p279 = por %p277, %p278
      %p280 = scmp.ne.s32.totalorder %s269, %s270
      %p281 = scmp.eq.s32.totalorder %s25, 0
      %p282 = por %p280, %p281
      %p283 = scmp.ne.s32.totalorder %s269, %s270
      %p284 = scmp.eq.s32.totalorder %s26, 1
      %p285 = por %p283, %p284
      %p287 = scmp.ne.s32.totalorder %s270, %s286
      %p288 = scmp.eq.s32.totalorder %s26, 0
      %p289 = por %p287, %p288
      %p290 = scmp.le.s32.totalorder 1, %s20
      %p291 = scmp.lt.s32.totalorder %s20, 3
      %p292 = pnand %p290, %p291
      %p293 = pneg %p292
      // Predicated region
      $region9: #{mlp_mixer_encoder_layer.1} parent=5 // pred_check
        _
      $region10: #{mlp_mixer_encoder_layer.1} parent=5 // pred_check_branch
        %295 = sbr.rel (%p292) target = $region12
      $region11: #{mlp_mixer_encoder_layer.1} parent=5 // pred_region
        %s296 = ssub.s32 %s20, 1
        // Predicated region
        $region13: #{mlp_mixer_encoder_layer.1} parent=11 // pred_check
          %p297 = pneg %p67
        $region14: #{mlp_mixer_encoder_layer.1} parent=11 // pred_check_branch
          %299 = sbr.rel (%p297) target = $region16
        $region15: #{mlp_mixer_encoder_layer.1} parent=11 // pred_region
          _
        $region16: #{mlp_mixer_encoder_layer.1} parent=11 // pred_fallthru
          _
        // Predicated region
        $region17: #{mlp_mixer_encoder_layer.1} parent=11 // pred_check
          %p300 = pneg %p88
        $region18: #{mlp_mixer_encoder_layer.1} parent=11 // pred_check_branch
          %302 = sbr.rel (%p300) target = $region20
        $region19: #{mlp_mixer_encoder_layer.1} parent=11 // pred_region
          _
        $region20: #{mlp_mixer_encoder_layer.1} parent=11 // pred_fallthru
          _
        // Predicated region
        $region21: #{mlp_mixer_encoder_layer.1} parent=11 // pred_check
          %p303 = pneg %p109
        $region22: #{mlp_mixer_encoder_layer.1} parent=11 // pred_check_branch
          %305 = sbr.rel (%p303) target = $region24
        $region23: #{mlp_mixer_encoder_layer.1} parent=11 // pred_region
          _
        $region24: #{mlp_mixer_encoder_layer.1} parent=11 // pred_fallthru
          _
        // Predicated region
        $region25: #{mlp_mixer_encoder_layer.1} parent=11 // pred_check
          %p306 = pneg %p130
        $region26: #{mlp_mixer_encoder_layer.1} parent=11 // pred_check_branch
          %308 = sbr.rel (%p306) target = $region28
        $region27: #{mlp_mixer_encoder_layer.1} parent=11 // pred_region
          _
        $region28: #{mlp_mixer_encoder_layer.1} parent=11 // pred_fallthru
          _
        // Predicated region
        $region29: #{mlp_mixer_encoder_layer.1} parent=11 // pred_check
          %p309 = pneg %p151
        $region30: #{mlp_mixer_encoder_layer.1} parent=11 // pred_check_branch
          %311 = sbr.rel (%p309) target = $region32
        $region31: #{mlp_mixer_encoder_layer.1} parent=11 // pred_region
          _
        $region32: #{mlp_mixer_encoder_layer.1} parent=11 // pred_fallthru
          _
        // Predicated region
        $region33: #{mlp_mixer_encoder_layer.1} parent=11 // pred_check
          %p312 = pneg %p172
        $region34: #{mlp_mixer_encoder_layer.1} parent=11 // pred_check_branch
          %314 = sbr.rel (%p312) target = $region36
        $region35: #{mlp_mixer_encoder_layer.1} parent=11 // pred_region
          _
        $region36: #{mlp_mixer_encoder_layer.1} parent=11 // pred_fallthru
          _
        // Predicated region
        $region37: #{mlp_mixer_encoder_layer.1} parent=11 // pred_check
          %p315 = pneg %p193
        $region38: #{mlp_mixer_encoder_layer.1} parent=11 // pred_check_branch
          %317 = sbr.rel (%p315) target = $region40
        $region39: #{mlp_mixer_encoder_layer.1} parent=11 // pred_region
          _
        $region40: #{mlp_mixer_encoder_layer.1} parent=11 // pred_fallthru
          _
        // Predicated region
        $region41: #{mlp_mixer_encoder_layer.1} parent=11 // pred_check
          %p318 = pneg %p214
        $region42: #{mlp_mixer_encoder_layer.1} parent=11 // pred_check_branch
          %320 = sbr.rel (%p318) target = $region44
        $region43: #{mlp_mixer_encoder_layer.1} parent=11 // pred_region
          _
        $region44: #{mlp_mixer_encoder_layer.1} parent=11 // pred_fallthru
          _
        // Predicated region
        $region45: #{mlp_mixer_encoder_layer.1} parent=11 // pred_check
          %p321 = pneg %p235
        $region46: #{mlp_mixer_encoder_layer.1} parent=11 // pred_check_branch
          %323 = sbr.rel (%p321) target = $region48
        $region47: #{mlp_mixer_encoder_layer.1} parent=11 // pred_region
          _
        $region48: #{mlp_mixer_encoder_layer.1} parent=11 // pred_fallthru
          _
        // Predicated region
        $region49: #{mlp_mixer_encoder_layer.1} parent=11 // pred_check
          %p324 = pneg %p256
        $region50: #{mlp_mixer_encoder_layer.1} parent=11 // pred_check_branch
          %326 = sbr.rel (%p324) target = $region52
        $region51: #{mlp_mixer_encoder_layer.1} parent=11 // pred_region
          _
        $region52: #{mlp_mixer_encoder_layer.1} parent=11 // pred_fallthru
          _
      $region12: #{mlp_mixer_encoder_layer.1} parent=5 // pred_fallthru
        _
      %p327 = scmp.lt.s32.totalorder %s20, 2
      // Predicated region
      $region53: #{mlp_mixer_encoder_layer.1} parent=5 // pred_check
        %p328 = pneg %p327
      $region54: #{mlp_mixer_encoder_layer.1} parent=5 // pred_check_branch
        %330 = sbr.rel (%p328) target = $region56
      $region55: #{mlp_mixer_encoder_layer.1} parent=5 // pred_region
        // Predicated region
        $region57: #{mlp_mixer_encoder_layer.1} parent=55 // pred_check
          %p331 = pneg %p40
        $region58: #{mlp_mixer_encoder_layer.1} parent=55 // pred_check_branch
          %333 = sbr.rel (%p331) target = $region60
        $region59: #{mlp_mixer_encoder_layer.1} parent=55 // pred_region
          %s334 = smul.u32 2, %s20
          %p335 = scmp.lt.s32.totalorder %s334, 3
          %s336 = scalar_select %p335, %s334, 3
          %s337 = smul.addr %s336, 2
          %s338 = smul.addr %s337, 8
          %s339 = scalar_lea.vmem %s0, %s338
          %s340 = smul.u32 2, %s20
        $region60: #{mlp_mixer_encoder_layer.1} parent=55 // pred_fallthru
          _
      $region56: #{mlp_mixer_encoder_layer.1} parent=5 // pred_fallthru
        _
      %p341 = scmp.le.s32.totalorder 1, %s20
      %p342 = scmp.lt.s32.totalorder %s20, 3
      %p343 = pnand %p341, %p342
      %p344 = pneg %p343
      // Predicated region
      $region61: #{mlp_mixer_encoder_layer.1} parent=5 // pred_check
        _
      $region62: #{mlp_mixer_encoder_layer.1} parent=5 // pred_check_branch
        %346 = sbr.rel (%p343) target = $region64
      $region63: #{mlp_mixer_encoder_layer.1} parent=5 // pred_region
        %s347 = ssub.s32 %s20, 1
        %s348 = smul.u32 2, %s25
        %p349 = scmp.lt.s32.totalorder %s348, 3
        %s350 = scalar_select %p349, %s348, 3
        %s351 = smul.addr %s350, 2
        %s352 = smul.addr %s351, 8
        %s353 = scalar_lea.vmem %s0, %s352
        %p354 = pneg %p46
        %p355 = pneg %p43
        %p356 = pneg %p67
        %p357 = pneg %p64
        %p358 = pneg %p88
        %p359 = pneg %p85
        %p360 = pneg %p109
        %p361 = pneg %p106
        %p362 = pneg %p130
        %p363 = pneg %p127
        %p364 = pneg %p151
        %p365 = pneg %p148
        %p366 = pneg %p172
        %p367 = pneg %p169
        %p368 = pneg %p193
        %p369 = pneg %p190
        %p370 = pneg %p214
        %p371 = pneg %p211
        %p372 = pneg %p235
        %p373 = pneg %p232
        %p374 = pneg %p256
        %p375 = pneg %p253
        %p376 = pneg %p282
        %p377 = pneg %p279
        %s378 = sand.u32 %s269, 1
        %s379 = scalar_lea.sflag [#allocation3], %s378
        %s380 = sand.u32 %s269, 1
        %s381 = smul.addr %s380, 32
        %s382 = scalar_lea.vmem [#allocation2], %s381
        %s383 = smul.u32 2, %s25
        %p384 = scmp.lt.s32.totalorder %s383, 3
        %s385 = scalar_select %p384, %s383, 3
        %s386 = smul.addr %s385, 2
        %s387 = smul.addr %s386, 8
        %s388 = scalar_lea.vmem %s0, %s387
        %s389 = smul.u32 2, %s25
        %s390 = smul.u32 2, %s25
        %v392 = vld [vmem:[%s6] sm:$0xff]
        %v393 = vld [vmem:[%s6 + $0x8] sm:$0xff]
        %395 = vset.pattern.permute.xlu0 0
        %396 = vperm.xlu0 %395, %v392
        %v397 = vpop.permute.xlu0 %396
        %400 = vset.pattern.permute.xlu0 0
        %401 = vperm.xlu0 %400, %v393
        %v402 = vpop.permute.xlu0 %401
        %v404 = vld [vmem:[%s7] sm:$0xff]
        %v405 = vld [vmem:[%s7 + $0x8] sm:$0xff]
        %407 = vset.pattern.permute.xlu0 0
        %408 = vperm.xlu0 %407, %v404
        %v409 = vpop.permute.xlu0 %408
        %412 = vset.pattern.permute.xlu0 0
        %413 = vperm.xlu0 %412, %v405
        %v414 = vpop.permute.xlu0 %413
        %v416 = vld [vmem:[%s8] sm:$0xff]
        %v417 = vld [vmem:[%s8 + $0x8] sm:$0xff]
        %419 = vset.pattern.permute.xlu0 0
        %420 = vperm.xlu0 %419, %v416
        %v421 = vpop.permute.xlu0 %420
        %424 = vset.pattern.permute.xlu0 0
        %425 = vperm.xlu0 %424, %v417
        %v426 = vpop.permute.xlu0 %425
        %v428 = vld [vmem:[%s10] sm:$0xff]
        %v429 = vld [vmem:[%s10 + $0x8] sm:$0xff]
        %431 = vset.pattern.permute.xlu0 0
        %432 = vperm.xlu0 %431, %v428
        %v433 = vpop.permute.xlu0 %432
        %436 = vset.pattern.permute.xlu0 0
        %437 = vperm.xlu0 %436, %v429
        %v438 = vpop.permute.xlu0 %437
        %v440 = vld [vmem:[%s388] sm:$0xff]
        %v441 = vld [vmem:[%s388 + $0x8] sm:$0xff]
        %v442 = vld [vmem:[%s388 + $0x10] sm:$0xff]
        %v443 = vld [vmem:[%s388 + $0x18] sm:$0xff]
        %v444 = vpack.c.bf16 %v441, %v440
        %v445 = vpack.c.bf16 %v443, %v442
        %v446 = vld [vmem:[%s1] sm:$0xf]
        %v447 = vld [vmem:[%s1 + $0x4] sm:$0xf]
        %v448 = vld [vmem:[%s1 + $0x8] sm:$0xf]
        %v449 = vld [vmem:[%s1 + $0xc] sm:$0xf]
        %v450 = vld [vmem:[%s2] sm:$0x1]
        %v452 = vlaneseq
        %v453 = vshrl.u32 %v452, 7
        %v454 = vsub.s32 0, %v453
        %v455 = vrot.slane %v450, %v454
        %v461 = vunpack.c.l.b16 %v446
        %v462 = vunpack.c.l.b16 %v447
        %v463 = vunpack.c.l.b16 %v448
        %v464 = vunpack.c.l.b16 %v449
        %v465 = vpack.c.b16 %v462, %v461
        %v466 = vpack.c.b16 %v464, %v463
        %vm469 = vcmask 261120
        %v471 = vsel %vm469, %v444, 0
        %v474 = vsel %vm469, %v445, 0
        %476 = vmatprep.subr.bf16.mxu0 0
        %477 = vmatpush1.bf16.msra.mxu0 %v465
        %478 = vmatprep.subr.bf16.mxu0 0
        %479 = vmatpush1.bf16.msra.mxu0 %v466
        %480 = vmatprep.subr.bf16.mxu0 0
        %481 = vmatpush1.bf16.msra.mxu0 0
        %482 = vmatprep.subr.bf16.mxu0 0
        %483 = vmatpush1.bf16.msra.mxu0 0
        %484 = vmatprep.subr.bf16.mxu0 0
        %485 = vmatpush1.bf16.msra.mxu0 0
        %486 = vmatprep.subr.bf16.mxu0 0
        %487 = vmatpush1.bf16.msra.mxu0 0
        %488 = vmatprep.subr.bf16.mxu0 0
        %489 = vmatpush1.bf16.msra.mxu0 0
        %490 = vmatprep.subr.bf16.mxu0 0
        %491 = vmatpush1.bf16.msra.mxu0 0
        %492 = vmatprep.subr.bf16.mxu0 0
        %493 = vmatpush1.bf16.msra.mxu0 0
        %494 = vmatprep.subr.bf16.mxu0 0
        %495 = vmatpush1.bf16.msra.mxu0 0
        %496 = vmatprep.subr.bf16.mxu0 0
        %497 = vmatpush1.bf16.msra.mxu0 0
        %498 = vmatprep.subr.bf16.mxu0 0
        %499 = vmatpush1.bf16.msra.mxu0 0
        %500 = vmatprep.subr.bf16.mxu0 0
        %501 = vmatpush1.bf16.msra.mxu0 0
        %502 = vmatprep.subr.bf16.mxu0 0
        %503 = vmatpush1.bf16.msra.mxu0 0
        %504 = vmatprep.subr.bf16.mxu0 0
        %505 = vmatpush1.bf16.msra.mxu0 0
        %506 = vmatprep.subr.bf16.mxu0 0
        %507 = vmatpush1.bf16.msra.mxu0 0
        %508 = vmatprep.mubr.bf16.mxu0 0
        %509 = vmatmul.mubr.bf16.gmra.mrb[0].mxu0 %v471
        %v510 = vpop.f32.mrb[0].mxu0
        %v511 = vadd.f32 %v455, %v510
        %v512 = vpop.f32.mrb[0].mxu0
        %v513 = vpop.f32.mrb[0].mxu0
        %v514 = vadd.f32 %v455, %v513
        %v515 = vpop.f32.mrb[0].mxu0
        %516 = vmatprep.mubr.bf16.mxu0 0
        %517 = vmatmul.mubr.bf16.gmra.mrb[0].mxu0 %v474
        %v518 = vpop.f32.mrb[0].mxu0
        %v519 = vadd.f32 %v455, %v518
        %v520 = vpop.f32.mrb[0].mxu0
        %v521 = vpop.f32.mrb[0].mxu0
        %v522 = vadd.f32 %v455, %v521
        %v523 = vpop.f32.mrb[0].mxu0
        %524 = vdwg.mxu0
        %v525 = vmul.f32 %v511, 0.5
        %v526 = vmul.f32 %v514, 0.5
        %v527 = vmul.f32 %v519, 0.5
        %v528 = vmul.f32 %v522, 0.5
        %v529 = vmul.f32 %v511, 0.70710677
        %v530 = vmul.f32 %v514, 0.70710677
        %v531 = vmul.f32 %v519, 0.70710677
        %v532 = vmul.f32 %v522, 0.70710677
        %v533 = verf.f32.pop %v529
        %v534 = verf.f32.pop %v530
        %v535 = verf.f32.pop %v531
        %v536 = verf.f32.pop %v532
        %v537 = vadd.f32 %v533, 1.0
        %v538 = vadd.f32 %v534, 1.0
        %v539 = vadd.f32 %v535, 1.0
        %v540 = vadd.f32 %v536, 1.0
        %v541 = vmul.f32 %v525, %v537
        %v542 = vmul.f32 %v526, %v538
        %v543 = vmul.f32 %v527, %v539
        %v544 = vmul.f32 %v528, %v540
        %v545 = vpack.c.bf16 %v542, %v541
        %v546 = vpack.c.bf16 %v544, %v543
        %v547 = vld [vmem:[%s3] sm:$0xf]
        %v548 = vld [vmem:[%s3 + $0x4] sm:$0xf]
        %v549 = vld [vmem:[%s3 + $0x8] sm:$0xf]
        %v550 = vld [vmem:[%s3 + $0xc] sm:$0xf]
        %v551 = vld [vmem:[%s4] sm:$0x1]
        %v553 = vlaneseq
        %v554 = vshrl.u32 %v553, 7
        %v555 = vsub.s32 0, %v554
        %v556 = vrot.slane %v551, %v555
        %v562 = vunpack.c.l.b16 %v547
        %v563 = vunpack.c.l.b16 %v548
        %v564 = vunpack.c.l.b16 %v549
        %v565 = vunpack.c.l.b16 %v550
        %v566 = vpack.c.b16 %v563, %v562
        %v567 = vpack.c.b16 %v565, %v564
        %v571 = vsel %vm469, %v545, 0
        %v574 = vsel %vm469, %v546, 0
        %576 = vmatprep.subr.bf16.mxu0 0
        %577 = vmatpush1.bf16.msra.mxu0 %v566
        %578 = vmatprep.subr.bf16.mxu0 0
        %579 = vmatpush1.bf16.msra.mxu0 %v567
        %580 = vmatprep.subr.bf16.mxu0 0
        %581 = vmatpush1.bf16.msra.mxu0 0
        %582 = vmatprep.subr.bf16.mxu0 0
        %583 = vmatpush1.bf16.msra.mxu0 0
        %584 = vmatprep.subr.bf16.mxu0 0
        %585 = vmatpush1.bf16.msra.mxu0 0
        %586 = vmatprep.subr.bf16.mxu0 0
        %587 = vmatpush1.bf16.msra.mxu0 0
        %588 = vmatprep.subr.bf16.mxu0 0
        %589 = vmatpush1.bf16.msra.mxu0 0
        %590 = vmatprep.subr.bf16.mxu0 0
        %591 = vmatpush1.bf16.msra.mxu0 0
        %592 = vmatprep.subr.bf16.mxu0 0
        %593 = vmatpush1.bf16.msra.mxu0 0
        %594 = vmatprep.subr.bf16.mxu0 0
        %595 = vmatpush1.bf16.msra.mxu0 0
        %596 = vmatprep.subr.bf16.mxu0 0
        %597 = vmatpush1.bf16.msra.mxu0 0
        %598 = vmatprep.subr.bf16.mxu0 0
        %599 = vmatpush1.bf16.msra.mxu0 0
        %600 = vmatprep.subr.bf16.mxu0 0
        %601 = vmatpush1.bf16.msra.mxu0 0
        %602 = vmatprep.subr.bf16.mxu0 0
        %603 = vmatpush1.bf16.msra.mxu0 0
        %604 = vmatprep.subr.bf16.mxu0 0
        %605 = vmatpush1.bf16.msra.mxu0 0
        %606 = vmatprep.subr.bf16.mxu0 0
        %607 = vmatpush1.bf16.msra.mxu0 0
        %608 = vmatprep.mubr.bf16.mxu0 0
        %609 = vmatmul.mubr.bf16.gmra.mrb[0].mxu0 %v571
        %v610 = vpop.f32.mrb[0].mxu0
        %v611 = vadd.f32 %v556, %v610
        %v612 = vpop.f32.mrb[0].mxu0
        %v613 = vpop.f32.mrb[0].mxu0
        %v614 = vadd.f32 %v556, %v613
        %v615 = vpop.f32.mrb[0].mxu0
        %616 = vmatprep.mubr.bf16.mxu0 0
        %617 = vmatmul.mubr.bf16.gmra.mrb[0].mxu0 %v574
        %v618 = vpop.f32.mrb[0].mxu0
        %v619 = vadd.f32 %v556, %v618
        %v620 = vpop.f32.mrb[0].mxu0
        %v621 = vpop.f32.mrb[0].mxu0
        %v622 = vadd.f32 %v556, %v621
        %v623 = vpop.f32.mrb[0].mxu0
        %624 = vdwg.mxu0
        %v625 = vadd.f32 %v440, %v611
        %v626 = vadd.f32 %v441, %v614
        %v627 = vadd.f32 %v442, %v619
        %v628 = vadd.f32 %v443, %v622
        %v629 = vpack.c.bf16 %v626, %v625
        %v630 = vpack.c.bf16 %v628, %v627
        %v631 = vld [vmem:[%s5] sm:$0xf]
        %v632 = vld [vmem:[%s5 + $0x4] sm:$0xf]
        %v635 = vunpack.c.l.b16 %v631
        %v636 = vunpack.c.l.b16 %v632
        %v637 = vpack.c.b16 %v636, %v635
        %vm638 = vcmask 130048
        %v640 = vsel %vm638, %v637, 0
        %642 = vmatprep.subr.bf16.mxu0 0
        %643 = vmatpush1.bf16.msra.mxu0 %v629
        %644 = vmatprep.subr.bf16.mxu0 0
        %645 = vmatpush1.bf16.msra.mxu0 0
        %646 = vmatprep.subr.bf16.mxu0 0
        %647 = vmatpush1.bf16.msra.mxu0 0
        %648 = vmatprep.subr.bf16.mxu0 0
        %649 = vmatpush1.bf16.msra.mxu0 0
        %650 = vmatprep.subr.bf16.mxu0 0
        %651 = vmatpush1.bf16.msra.mxu0 0
        %652 = vmatprep.subr.bf16.mxu0 0
        %653 = vmatpush1.bf16.msra.mxu0 0
        %654 = vmatprep.subr.bf16.mxu0 0
        %655 = vmatpush1.bf16.msra.mxu0 0
        %656 = vmatprep.subr.bf16.mxu0 0
        %657 = vmatpush1.bf16.msra.mxu0 0
        %658 = vmatprep.subr.bf16.mxu0 0
        %659 = vmatpush1.bf16.msra.mxu0 0
        %660 = vmatprep.subr.bf16.mxu0 0
        %661 = vmatpush1.bf16.msra.mxu0 0
        %662 = vmatprep.subr.bf16.mxu0 0
        %663 = vmatpush1.bf16.msra.mxu0 0
        %664 = vmatprep.subr.bf16.mxu0 0
        %665 = vmatpush1.bf16.msra.mxu0 0
        %666 = vmatprep.subr.bf16.mxu0 0
        %667 = vmatpush1.bf16.msra.mxu0 0
        %668 = vmatprep.subr.bf16.mxu0 0
        %669 = vmatpush1.bf16.msra.mxu0 0
        %670 = vmatprep.subr.bf16.mxu0 0
        %671 = vmatpush1.bf16.msra.mxu0 0
        %672 = vmatprep.subr.bf16.mxu0 0
        %673 = vmatpush1.bf16.msra.mxu0 0
        %674 = vmatprep.mubr.bf16.mxu0 0
        %675 = vmatmul.mubr.bf16.gmra.mrb[0].mxu0 %v640
        %v676 = vpop.f32.mrb[0].mxu0
        %v677 = vadd.f32 %v397, %v676
        %v678 = vpop.f32.mrb[0].mxu0
        %v679 = vpop.f32.mrb[0].mxu0
        %v680 = vadd.f32 %v402, %v679
        %v681 = vpop.f32.mrb[0].mxu0
        %682 = vdwg.mxu0
        %v683 = vsel %vm469, %v677, 0.0
        %v684 = vsel %vm469, %v680, 0.0
        %v685 = vadd.f32 %v683, %v684
        %v686 = vrot.slane %v685, 4
        %v687 = vadd.f32 %v685, %v686
        %v688 = vrot.slane %v687, 2
        %v689 = vadd.f32 %v687, %v688
        %v690 = vrot.slane %v689, 1
        %v691 = vadd.f32 %v689, %v690
        %v692 = vrcp.pop 16.0
        %v693 = vmul.f32 %v691, %v692
        %v694 = vsub.f32 %v677, %v693
        %v695 = vsub.f32 %v680, %v693
        %v696 = vmul.f32 %v694, %v694
        %v697 = vmul.f32 %v695, %v695
        %v698 = vsel %vm469, %v696, 0.0
        %v699 = vsel %vm469, %v697, 0.0
        %v700 = vadd.f32 %v698, %v699
        %v701 = vrot.slane %v700, 4
        %v702 = vadd.f32 %v700, %v701
        %v703 = vrot.slane %v702, 2
        %v704 = vadd.f32 %v702, %v703
        %v705 = vrot.slane %v704, 1
        %v706 = vadd.f32 %v704, %v705
        %v707 = vmul.f32 %v706, %v692
        %v708 = vadd.f32 %v707, 1e-05
        %v709 = vrsqrt.pop %v708
        %v710 = vmul.f32 %v694, %v709
        %v711 = vmul.f32 %v695, %v709
        %v712 = vmul.f32 %v710, %v409
        %v713 = vmul.f32 %v711, %v414
        %v714 = vadd.f32 %v712, %v421
        %v715 = vadd.f32 %v713, %v426
        %v716 = vmul.f32 %v714, 0.5
        %v717 = vmul.f32 %v715, 0.5
        %v718 = vmul.f32 %v714, 0.70710677
        %v719 = vmul.f32 %v715, 0.70710677
        %v720 = verf.f32.pop %v718
        %v721 = verf.f32.pop %v719
        %v722 = vadd.f32 %v720, 1.0
        %v723 = vadd.f32 %v721, 1.0
        %v724 = vmul.f32 %v716, %v722
        %v725 = vmul.f32 %v717, %v723
        %v726 = vld [vmem:[%s9] sm:$0xf]
        %v727 = vld [vmem:[%s9 + $0x4] sm:$0xf]
        %v728 = vpack.c.bf16 %v725, %v724
        %v731 = vunpack.c.l.b16 %v726
        %v732 = vunpack.c.l.b16 %v727
        %v733 = vpack.c.b16 %v732, %v731
        %v735 = vsel %vm638, %v733, 0
        %737 = vmatprep.subr.bf16.mxu0 0
        %738 = vmatpush1.bf16.msra.mxu0 %v728
        %739 = vmatprep.subr.bf16.mxu0 0
        %740 = vmatpush1.bf16.msra.mxu0 0
        %741 = vmatprep.subr.bf16.mxu0 0
        %742 = vmatpush1.bf16.msra.mxu0 0
        %743 = vmatprep.subr.bf16.mxu0 0
        %744 = vmatpush1.bf16.msra.mxu0 0
        %745 = vmatprep.subr.bf16.mxu0 0
        %746 = vmatpush1.bf16.msra.mxu0 0
        %747 = vmatprep.subr.bf16.mxu0 0
        %748 = vmatpush1.bf16.msra.mxu0 0
        %749 = vmatprep.subr.bf16.mxu0 0
        %750 = vmatpush1.bf16.msra.mxu0 0
        %751 = vmatprep.subr.bf16.mxu0 0
        %752 = vmatpush1.bf16.msra.mxu0 0
        %753 = vmatprep.subr.bf16.mxu0 0
        %754 = vmatpush1.bf16.msra.mxu0 0
        %755 = vmatprep.subr.bf16.mxu0 0
        %756 = vmatpush1.bf16.msra.mxu0 0
        %757 = vmatprep.subr.bf16.mxu0 0
        %758 = vmatpush1.bf16.msra.mxu0 0
        %759 = vmatprep.subr.bf16.mxu0 0
        %760 = vmatpush1.bf16.msra.mxu0 0
        %761 = vmatprep.subr.bf16.mxu0 0
        %762 = vmatpush1.bf16.msra.mxu0 0
        %763 = vmatprep.subr.bf16.mxu0 0
        %764 = vmatpush1.bf16.msra.mxu0 0
        %765 = vmatprep.subr.bf16.mxu0 0
        %766 = vmatpush1.bf16.msra.mxu0 0
        %767 = vmatprep.subr.bf16.mxu0 0
        %768 = vmatpush1.bf16.msra.mxu0 0
        %769 = vmatprep.mubr.bf16.mxu0 0
        %770 = vmatmul.mubr.bf16.gmra.mrb[0].mxu0 %v735
        %v771 = vpop.f32.mrb[0].mxu0
        %v772 = vadd.f32 %v433, %v771
        %v773 = vpop.f32.mrb[0].mxu0
        %v774 = vpop.f32.mrb[0].mxu0
        %v775 = vadd.f32 %v438, %v774
        %v776 = vpop.f32.mrb[0].mxu0
        %777 = vdwg.mxu0
        %v778 = vadd.f32 %v625, %v772
        %v779 = vadd.f32 %v626, %v775
        %780 = vst.msk [vmem:[%s382] sm:$0xff] %vm469, %v778
        %781 = vst.msk [vmem:[%s382 + $0x8] sm:$0xff] %vm469, %v779
        %v782 = vld [vmem:[%s5] sm:$0xf]
        %v783 = vld [vmem:[%s5 + $0x4] sm:$0xf]
        %v786 = vunpack.c.l.b16 %v782
        %v787 = vunpack.c.l.b16 %v783
        %v788 = vpack.c.b16 %v787, %v786
        %v790 = vsel %vm638, %v788, 0
        %792 = vmatprep.subr.bf16.mxu0 0
        %793 = vmatpush1.bf16.msra.mxu0 %v630
        %794 = vmatprep.subr.bf16.mxu0 0
        %795 = vmatpush1.bf16.msra.mxu0 0
        %796 = vmatprep.subr.bf16.mxu0 0
        %797 = vmatpush1.bf16.msra.mxu0 0
        %798 = vmatprep.subr.bf16.mxu0 0
        %799 = vmatpush1.bf16.msra.mxu0 0
        %800 = vmatprep.subr.bf16.mxu0 0
        %801 = vmatpush1.bf16.msra.mxu0 0
        %802 = vmatprep.subr.bf16.mxu0 0
        %803 = vmatpush1.bf16.msra.mxu0 0
        %804 = vmatprep.subr.bf16.mxu0 0
        %805 = vmatpush1.bf16.msra.mxu0 0
        %806 = vmatprep.subr.bf16.mxu0 0
        %807 = vmatpush1.bf16.msra.mxu0 0
        %808 = vmatprep.subr.bf16.mxu0 0
        %809 = vmatpush1.bf16.msra.mxu0 0
        %810 = vmatprep.subr.bf16.mxu0 0
        %811 = vmatpush1.bf16.msra.mxu0 0
        %812 = vmatprep.subr.bf16.mxu0 0
        %813 = vmatpush1.bf16.msra.mxu0 0
        %814 = vmatprep.subr.bf16.mxu0 0
        %815 = vmatpush1.bf16.msra.mxu0 0
        %816 = vmatprep.subr.bf16.mxu0 0
        %817 = vmatpush1.bf16.msra.mxu0 0
        %818 = vmatprep.subr.bf16.mxu0 0
        %819 = vmatpush1.bf16.msra.mxu0 0
        %820 = vmatprep.subr.bf16.mxu0 0
        %821 = vmatpush1.bf16.msra.mxu0 0
        %822 = vmatprep.subr.bf16.mxu0 0
        %823 = vmatpush1.bf16.msra.mxu0 0
        %824 = vmatprep.mubr.bf16.mxu0 0
        %825 = vmatmul.mubr.bf16.gmra.mrb[0].mxu0 %v790
        %v826 = vpop.f32.mrb[0].mxu0
        %v827 = vadd.f32 %v397, %v826
        %v828 = vpop.f32.mrb[0].mxu0
        %v829 = vpop.f32.mrb[0].mxu0
        %v830 = vadd.f32 %v402, %v829
        %v831 = vpop.f32.mrb[0].mxu0
        %832 = vdwg.mxu0
        %v833 = vsel %vm469, %v827, 0.0
        %v834 = vsel %vm469, %v830, 0.0
        %v835 = vadd.f32 %v833, %v834
        %v836 = vrot.slane %v835, 4
        %v837 = vadd.f32 %v835, %v836
        %v838 = vrot.slane %v837, 2
        %v839 = vadd.f32 %v837, %v838
        %v840 = vrot.slane %v839, 1
        %v841 = vadd.f32 %v839, %v840
        %v842 = vmul.f32 %v841, %v692
        %v843 = vsub.f32 %v827, %v842
        %v844 = vsub.f32 %v830, %v842
        %v845 = vmul.f32 %v843, %v843
        %v846 = vmul.f32 %v844, %v844
        %v847 = vsel %vm469, %v845, 0.0
        %v848 = vsel %vm469, %v846, 0.0
        %v849 = vadd.f32 %v847, %v848
        %v850 = vrot.slane %v849, 4
        %v851 = vadd.f32 %v849, %v850
        %v852 = vrot.slane %v851, 2
        %v853 = vadd.f32 %v851, %v852
        %v854 = vrot.slane %v853, 1
        %v855 = vadd.f32 %v853, %v854
        %v856 = vmul.f32 %v855, %v692
        %v857 = vadd.f32 %v856, 1e-05
        %v858 = vrsqrt.pop %v857
        %v859 = vmul.f32 %v843, %v858
        %v860 = vmul.f32 %v844, %v858
        %v861 = vmul.f32 %v859, %v409
        %v862 = vmul.f32 %v860, %v414
        %v863 = vadd.f32 %v861, %v421
        %v864 = vadd.f32 %v862, %v426
        %v865 = vmul.f32 %v863, 0.5
        %v866 = vmul.f32 %v864, 0.5
        %v867 = vmul.f32 %v863, 0.70710677
        %v868 = vmul.f32 %v864, 0.70710677
        %v869 = verf.f32.pop %v867
        %v870 = verf.f32.pop %v868
        %v871 = vadd.f32 %v869, 1.0
        %v872 = vadd.f32 %v870, 1.0
        %v873 = vmul.f32 %v865, %v871
        %v874 = vmul.f32 %v866, %v872
        %v875 = vld [vmem:[%s9] sm:$0xf]
        %v876 = vld [vmem:[%s9 + $0x4] sm:$0xf]
        %v877 = vpack.c.bf16 %v874, %v873
        %v880 = vunpack.c.l.b16 %v875
        %v881 = vunpack.c.l.b16 %v876
        %v882 = vpack.c.b16 %v881, %v880
        %v884 = vsel %vm638, %v882, 0
        %886 = vmatprep.subr.bf16.mxu0 0
        %887 = vmatpush1.bf16.msra.mxu0 %v877
        %888 = vmatprep.subr.bf16.mxu0 0
        %889 = vmatpush1.bf16.msra.mxu0 0
        %890 = vmatprep.subr.bf16.mxu0 0
        %891 = vmatpush1.bf16.msra.mxu0 0
        %892 = vmatprep.subr.bf16.mxu0 0
        %893 = vmatpush1.bf16.msra.mxu0 0
        %894 = vmatprep.subr.bf16.mxu0 0
        %895 = vmatpush1.bf16.msra.mxu0 0
        %896 = vmatprep.subr.bf16.mxu0 0
        %897 = vmatpush1.bf16.msra.mxu0 0
        %898 = vmatprep.subr.bf16.mxu0 0
        %899 = vmatpush1.bf16.msra.mxu0 0
        %900 = vmatprep.subr.bf16.mxu0 0
        %901 = vmatpush1.bf16.msra.mxu0 0
        %902 = vmatprep.subr.bf16.mxu0 0
        %903 = vmatpush1.bf16.msra.mxu0 0
        %904 = vmatprep.subr.bf16.mxu0 0
        %905 = vmatpush1.bf16.msra.mxu0 0
        %906 = vmatprep.subr.bf16.mxu0 0
        %907 = vmatpush1.bf16.msra.mxu0 0
        %908 = vmatprep.subr.bf16.mxu0 0
        %909 = vmatpush1.bf16.msra.mxu0 0
        %910 = vmatprep.subr.bf16.mxu0 0
        %911 = vmatpush1.bf16.msra.mxu0 0
        %912 = vmatprep.subr.bf16.mxu0 0
        %913 = vmatpush1.bf16.msra.mxu0 0
        %914 = vmatprep.subr.bf16.mxu0 0
        %915 = vmatpush1.bf16.msra.mxu0 0
        %916 = vmatprep.subr.bf16.mxu0 0
        %917 = vmatpush1.bf16.msra.mxu0 0
        %918 = vmatprep.mubr.bf16.mxu0 0
        %919 = vmatmul.mubr.bf16.gmra.mrb[0].mxu0 %v884
        %v920 = vpop.f32.mrb[0].mxu0
        %v921 = vadd.f32 %v433, %v920
        %v922 = vpop.f32.mrb[0].mxu0
        %v923 = vpop.f32.mrb[0].mxu0
        %v924 = vadd.f32 %v438, %v923
        %v925 = vpop.f32.mrb[0].mxu0
        %926 = vdwg.mxu0
        %v927 = vadd.f32 %v627, %v921
        %v928 = vadd.f32 %v628, %v924
        %s929 = scalar_lea.vmem %s382, 16 [#allocation2]
        %930 = vst.msk [vmem:[%s929] sm:$0xff] %vm469, %v927
        %931 = vst.msk [vmem:[%s929 + $0x8] sm:$0xff] %vm469, %v928
        %s932 = sand.u32 %s269, 1
        %s933 = scalar_lea.sflag [#allocation3], %s932
        %s934 = sand.u32 %s269, 1
        %s935 = smul.addr %s934, 32
        %s936 = scalar_lea.vmem [#allocation2], %s935
        // Predicated region
        $region65: #{mlp_mixer_encoder_layer.1} parent=63 // pred_check
          %p937 = pneg %p279
        $region66: #{mlp_mixer_encoder_layer.1} parent=63 // pred_check_branch
          %939 = sbr.rel (%p937) target = $region68
        $region67: #{mlp_mixer_encoder_layer.1} parent=63 // pred_region
          %s940 = smul.u32 2, %s25
          %s942 = ssub.s32 512, 512
          %943 = vsyncadd %s933, %s942
          %s944 = smul.addr %s940, 2
          %s945 = smul.addr %s944, 128
          %s946 = scalar_lea.hbm %s11, %s945
          %s947 = sshll.u32 %s936, 4
          %s948 = int_to_ptr.vmem [resolvable:$true] %s947
          %953 = dma.vmem_to_hbm [thread:$0]  %s948, 512, %s946, %s933, 128, 128, 8
        $region68: #{mlp_mixer_encoder_layer.1} parent=63 // pred_fallthru
          _
      $region64: #{mlp_mixer_encoder_layer.1} parent=5 // pred_fallthru
        _
      %p954 = scmp.le.s32.totalorder 2, %s20
      // Predicated region
      $region69: #{mlp_mixer_encoder_layer.1} parent=5 // pred_check
        %p955 = pneg %p954
      $region70: #{mlp_mixer_encoder_layer.1} parent=5 // pred_check_branch
        %957 = sbr.rel (%p955) target = $region72
      $region71: #{mlp_mixer_encoder_layer.1} parent=5 // pred_region
        %s958 = ssub.s32 %s20, 2
        // Predicated region
        $region73: #{mlp_mixer_encoder_layer.1} parent=71 // pred_check
          %p959 = pneg %p285
        $region74: #{mlp_mixer_encoder_layer.1} parent=71 // pred_check_branch
          %961 = sbr.rel (%p959) target = $region76
        $region75: #{mlp_mixer_encoder_layer.1} parent=71 // pred_region
          %s962 = sand.u32 %s270, 1
          %s963 = scalar_lea.sflag [#allocation3], %s962
          %s964 = sand.u32 %s270, 1
          %s965 = smul.addr %s964, 32
          %s966 = scalar_lea.vmem [#allocation2], %s965
          %967 = dma.done %s963, 512
        $region76: #{mlp_mixer_encoder_layer.1} parent=71 // pred_fallthru
          _
      $region72: #{mlp_mixer_encoder_layer.1} parent=5 // pred_fallthru
        _
    $region6: #{mlp_mixer_encoder_layer.1} parent=1 // loop_footer
      %s24 = sadd.s32 1, %s20
    $region7: #{mlp_mixer_encoder_layer.1} parent=1 // loop_footer_branch
      %19 = sbr.rel target = $region3
    $region8: #{mlp_mixer_encoder_layer.1} parent=1 // loop_exit
      _
    %968 = vsyncpa [#allocation3], 1
    %s969 = scalar_lea.sflag [#allocation3], 1
    %970 = vsyncpa %s969, 1

</llo_original>
